<compile_context>
chip_gen: v6e
topology: v6e:2x2x1
jax: 0.10.0
libtpu: 0.0.40
codegen_flags: <defaults>
</compile_context>

<pallas_src>
import functools

import jax
import jax.numpy as jnp
from jax.experimental import pallas as pl
from jax.experimental.pallas import tpu as pltpu


# --------------------------------------------------------------------------
# Fused whole-network kernel (single grid step; batch folded into rows)
# --------------------------------------------------------------------------
def _prototype_kernel(x_ref, w1_ref, wslab_ref, tslab_ref, o_ref, *,
                      n_seg, n_f1, share, k3):
    m_in, cin = x_ref.shape

    # ---- halo masks, hoisted: built ONCE per row extent (no per-shift iota) --
    ridx = jax.lax.broadcasted_iota(jnp.int32, (m_in, 1), 0)
    if m_in != n_seg:
        ridx = ridx % n_seg
    mpos_in = ridx < (n_seg - 1)          # rows allowed to read row r+1
    mneg_in = ridx >= 1                   # rows allowed to read row r-1
    if share:
        mpos_f, mneg_f = mpos_in, mneg_in
    else:
        ridx_f = jax.lax.broadcasted_iota(jnp.int32, (n_f1, 1), 0)
        if n_f1 != n_seg:
            ridx_f = ridx_f % n_seg
        mpos_f = ridx_f < (n_seg - 1)
        mneg_f = ridx_f >= 1

    def shift(a, s, mpos, mneg):
        # out[r] = a[r + s] within each length-n_seg segment, else 0.
        rolled = pltpu.roll(a, shift=(-s) % a.shape[0], axis=0)
        return jnp.where(mpos if s > 0 else mneg, rolled, jnp.zeros_like(rolled))

    def lrelu(y):
        return jnp.where(y > 0, y, 0.01 * y)

    def tap_cat(a, mpos, mneg):
        # [x(r-1) | x(r) | x(r+1)] along lanes -> one matmul for all 3 taps.
        return jnp.concatenate(
            [shift(a, -1, mpos, mneg), a, shift(a, +1, mpos, mneg)], axis=-1)

    x = x_ref[...]                         # (M_in, Cin) f32 activations
    T = tslab_ref[...]                     # (5, 64)  f32 folded-BN shifts

    # ---- conv1: Cin -> 32 (+BN+LeakyReLU) -----------------------------------
    w1 = w1_ref[...]                       # (3*Cin, 32) f32
    if cin == 1:
        # Depth-1 contraction: VPU broadcast MACs, accumulator seeded by tap 0.
        acc1 = shift(x, -1, mpos_in, mneg_in) * w1[0:1, :]
        acc1 = acc1 + x * w1[1:2, :]
        acc1 = acc1 + shift(x, +1, mpos_in, mneg_in) * w1[2:3, :]
    else:
        acc1 = jnp.dot(tap_cat(x, mpos_in, mneg_in), w1,
                       preferred_element_type=jnp.float32)
    a1 = lrelu(acc1 + T[0:1, :32])                       # (M_in, 32) f32

    # ---- conv2: 32 -> 64, single tap-folded bf16 matmul (K = 96) ------------
    x2 = tap_cat(a1, mpos_in, mneg_in).astype(jnp.bfloat16)
    a2 = lrelu(jnp.dot(x2, wslab_ref[0:96, :],
                       preferred_element_type=jnp.float32) + T[1:2, :])

    # ---- conv3 on channel-concat(feat1, feat2) ------------------------------
    # concat([f1, f2], ch) @ W == [f1 | f2] against the flattened weight; when
    # scan2 is scan1 the host pre-summed the two weight halves (K = 192).
    if share:
        x3 = tap_cat(a2, mpos_f, mneg_f).astype(jnp.bfloat16)          # (N,192)
    else:
        f1 = a2[:n_f1]
        f2 = a2[n_f1:]
        x3 = jnp.concatenate(
            [shift(f1, -1, mpos_f, mneg_f), shift(f2, -1, mpos_f, mneg_f),
             f1, f2,
             shift(f1, +1, mpos_f, mneg_f), shift(f2, +1, mpos_f, mneg_f)],
            axis=-1).astype(jnp.bfloat16)                              # (N,384)
    a3 = lrelu(jnp.dot(x3, wslab_ref[96:96 + k3, :],
                       preferred_element_type=jnp.float32) + T[2:3, :])

    # ---- conv4: 64 -> 32 (slab cols 32:64 are zero padding) -----------------
    o4 = 96 + k3
    x4 = tap_cat(a3, mpos_f, mneg_f).astype(jnp.bfloat16)              # (N,192)
    a4 = lrelu(jnp.dot(x4, wslab_ref[o4:o4 + 192, :],
                       preferred_element_type=jnp.float32) + T[3:4, :])

    # ---- flow_reg: pointwise 32 -> 2 (+BN+LeakyReLU), padded to 64 lanes ----
    y = lrelu(jnp.dot(a4.astype(jnp.bfloat16),
                      wslab_ref[o4 + 192:o4 + 256, :],
                      preferred_element_type=jnp.float32) + T[4:5, :])

    # ---- lane-dense store: zero-extend 64 -> 128 lanes; host keeps [:, :2] --
    pad = jnp.zeros((y.shape[0], o_ref.shape[1] - y.shape[1]), jnp.float32)
    o_ref[...] = jnp.concatenate([y, pad], axis=-1).astype(o_ref.dtype)


# --------------------------------------------------------------------------
# Host-side packing + pallas_call wrapper
# --------------------------------------------------------------------------
def _pack_params(params, share):
    """Pack folded weights into one bf16 slab + one f32 shift slab."""
    w1, t1 = params["conv1"]
    w2, t2 = params["conv2"]
    w3, t3 = params["conv3"]
    w4, t4 = params["conv4"]
    w5, t5 = params["flow_reg"]            # w5: (32, 2), t5: (1, 2)

    if share:                              # feat2 == feat1: pre-sum weight halves
        c = w3.shape[1] // 2
        w3 = w3[:, :c, :] + w3[:, c:, :]

    w1f = w1.reshape(-1, w1.shape[-1]).astype(jnp.float32)            # (3*Cin, 32)
    w2f = w2.reshape(-1, w2.shape[-1])                                 # (96, 64)
    w3f = w3.reshape(-1, w3.shape[-1])                                 # (192|384, 64)
    w4f = jnp.pad(w4.reshape(-1, w4.shape[-1]), ((0, 0), (0, 32)))     # (192, 64)
    w5f = jnp.pad(w5, ((0, 64 - w5.shape[0]), (0, 64 - w5.shape[1])))  # (64, 64)
    wslab = jnp.concatenate([w2f, w3f, w4f, w5f], axis=0).astype(jnp.bfloat16)

    def row(t):
        return jnp.pad(t, ((0, 0), (0, 64 - t.shape[1])))
    tslab = jnp.concatenate([row(t1), row(t2), row(t3), row(t4), row(t5)],
                            axis=0).astype(jnp.float32)                # (5, 64)
    return w1f, wslab, tslab, int(w3f.shape[0])


def _fused_forward(xs, w1f, wslab, tslab, *, n_seg, n_f1, share, k3):
    kernel = functools.partial(_prototype_kernel, n_seg=n_seg, n_f1=n_f1,
                               share=share, k3=k3)
    return pl.pallas_call(
        kernel,
        out_shape=jax.ShapeDtypeStruct((n_f1, 128), jnp.float32),
        grid=(1,),                                      # single fused step
        in_specs=[
            pl.BlockSpec(xs.shape, lambda i: (0, 0)),
            pl.BlockSpec(w1f.shape, lambda i: (0, 0)),
            pl.BlockSpec(wslab.shape, lambda i: (0, 0)),
            pl.BlockSpec(tslab.shape, lambda i: (0, 0)),
        ],
        out_specs=pl.BlockSpec((n_f1, 128), lambda i: (0, 0)),
        compiler_params=pltpu.CompilerParams(
            dimension_semantics=("arbitrary",)),
    )(xs, w1f, wslab, tslab)


@jax.jit
def prototype_forward(params, scan1, scan2=None):
    """scan1/scan2: (B, n_pts, in_channel) f32.  Returns (B, n_pts, 2) f32."""
    share = scan2 is None                               # static under jit
    B, n_pts, cin = scan1.shape
    xs = scan1.reshape(B * n_pts, cin)
    if not share:
        xs = jnp.concatenate([xs, scan2.reshape(B * n_pts, cin)], axis=0)
    w1f, wslab, tslab, k3 = _pack_params(params, share)
    out = _fused_forward(xs.astype(jnp.float32), w1f, wslab, tslab,
                         n_seg=n_pts, n_f1=B * n_pts, share=share, k3=k3)
    return out[:, :2].reshape(B, n_pts, 2)


# --------------------------------------------------------------------------
# Parameter init (deterministic, BN folded for inference)
# --------------------------------------------------------------------------
def _init_block(key, cin, cout, kernel_size):
    """Conv1d + BatchNorm1d folded to (tap-major weight, per-channel shift)."""
    kw, kb, kg, kbe, km, kv = jax.random.split(key, 6)
    eps = 1e-5
    fan = cin * kernel_size
    w = jax.random.normal(kw, (kernel_size, cin, cout), jnp.float32) / jnp.sqrt(fan)
    bias = 0.05 * jax.random.normal(kb, (cout,), jnp.float32)
    gamma = 1.0 + 0.1 * jax.random.normal(kg, (cout,), jnp.float32)
    beta = 0.05 * jax.random.normal(kbe, (cout,), jnp.float32)
    running_mean = 0.05 * jax.random.normal(km, (cout,), jnp.float32)
    running_var = 1.0 + 0.1 * jax.nn.sigmoid(jax.random.normal(kv, (cout,), jnp.float32))
    scale = gamma / jnp.sqrt(running_var + eps)
    w_folded = w * scale[None, None, :]                    # fold BN scale into W
    shift = ((bias - running_mean) * scale + beta).reshape(1, cout)
    return w_folded, shift


def init_prototype_params(key, in_channel=1):
    ks = jax.random.split(key, 5)
    w1, t1 = _init_block(ks[0], in_channel, 32, 3)
    w2, t2 = _init_block(ks[1], 32, 64, 3)
    w3, t3 = _init_block(ks[2], 128, 64, 3)
    w4, t4 = _init_block(ks[3], 64, 32, 3)
    w5, t5 = _init_block(ks[4], 32, 2, 1)                  # pointwise conv
    return {"conv1": (w1, t1), "conv2": (w2, t2), "conv3": (w3, t3),
            "conv4": (w4, t4), "flow_reg": (w5[0], t5)}    # w5: (32, 2)


# --------------------------------------------------------------------------
# Pure-JAX references (correctness checking only)
# --------------------------------------------------------------------------
def _ref_forward(params, scan1, scan2=None, *, mxu_bf16=False):
    """mxu_bf16=False: HIGHEST-precision f32 reference.
    mxu_bf16=True : mirrors the kernel's bf16 matmul / f32 accumulate dataflow."""
    share = scan2 is None
    if share:
        scan2 = scan1
    w1, t1 = params["conv1"]
    w2, t2 = params["conv2"]
    w3, t3 = params["conv3"]
    w4, t4 = params["conv4"]
    w5, t5 = params["flow_reg"]

    def conv3(a, w, t, bf16):
        n = a.shape[1]
        ap = jnp.pad(a, ((0, 0), (1, 1), (0, 0)))
        if bf16:
            taps = [jnp.einsum('bnc,cd->bnd',
                               ap[:, k:k + n].astype(jnp.bfloat16),
                               w[k].astype(jnp.bfloat16),
                               preferred_element_type=jnp.float32)
                    for k in range(3)]
        else:
            taps = [jnp.einsum('bnc,cd->bnd', ap[:, k:k + n], w[k],
                               precision=jax.lax.Precision.HIGHEST)
                    for k in range(3)]
        y = taps[0] + taps[1] + taps[2] + t[0]
        return jnp.where(y > 0, y, 0.01 * y)

    f1 = conv3(conv3(scan1, w1, t1, False), w2, t2, mxu_bf16)
    if share and mxu_bf16:
        c = w3.shape[1] // 2
        f = conv3(f1, w3[:, :c, :] + w3[:, c:, :], t3, True)
    else:
        f2 = f1 if share else conv3(conv3(scan2, w1, t1, False), w2, t2, mxu_bf16)
        f = conv3(jnp.concatenate([f1, f2], axis=-1), w3, t3, mxu_bf16)
    f = conv3(f, w4, t4, mxu_bf16)
    if mxu_bf16:
        y = jnp.einsum('bnc,cd->bnd', f.astype(jnp.bfloat16),
                       w5.astype(jnp.bfloat16),
                       preferred_element_type=jnp.float32) + t5[0]
    else:
        y = jnp.einsum('bnc,cd->bnd', f, w5,
                       precision=jax.lax.Precision.HIGHEST) + t5[0]
    return jnp.where(y > 0, y, 0.01 * y)


if __name__ == "__main__":
    key = jax.random.PRNGKey(0)
    k_param, k_d1, k_d2 = jax.random.split(key, 3)

    B, N, C_IN = 2, 64, 1
    params = init_prototype_params(k_param, in_channel=C_IN)
    scan1 = jax.random.normal(k_d1, (B, N, C_IN), jnp.float32)
    scan2 = jax.random.normal(k_d2, (B, N, C_IN), jnp.float32)

    # Default path: scan2 is None -> shared features, pre-summed conv3 weight.
    out1 = jax.block_until_ready(prototype_forward(params, scan1))
    # Two-scan path: both scans (all batches) stacked along rows, one grid step.
    out2 = jax.block_until_ready(prototype_forward(params, scan1, scan2))

    assert out1.shape == (B, N, 2) and out2.shape == (B, N, 2)
    assert out1.dtype == jnp.float32 and out2.dtype == jnp.float32
    assert bool(jnp.all(jnp.isfinite(out1))) and bool(jnp.all(jnp.isfinite(out2)))

    # Tight check vs a reference that mirrors the kernel's bf16 matmul dataflow.
    mref1 = _ref_forward(params, scan1, mxu_bf16=True)
    mref2 = _ref_forward(params, scan1, scan2, mxu_bf16=True)
    # Loose sanity check vs the full-precision f32 reference.
    fref1 = _ref_forward(params, scan1)
    fref2 = _ref_forward(params, scan1, scan2)

    err_m1 = float(jnp.max(jnp.abs(out1 - mref1)))
    err_m2 = float(jnp.max(jnp.abs(out2 - mref2)))
    err_f1 = float(jnp.max(jnp.abs(out1 - fref1)))
    err_f2 = float(jnp.max(jnp.abs(out2 - fref2)))
    assert err_m1 < 5e-2, f"shared-path mismatch vs bf16 reference: {err_m1}"
    assert err_m2 < 5e-2, f"two-scan-path mismatch vs bf16 reference: {err_m2}"
    assert err_f1 < 2e-1, f"shared-path drift vs f32 reference: {err_f1}"
    assert err_f2 < 2e-1, f"two-scan-path drift vs f32 reference: {err_f2}"

    print("KERNEL_OK")
</pallas_src>

<mosaic_0001>
module attributes {stable_mosaic.version = 11 : i64} {
  func.func @_prototype_kernel(%arg0: i32, %arg1: memref<128x1xf32, #tpu.memory_space<vmem>>, %arg2: memref<3x32xf32, #tpu.memory_space<vmem>>, %arg3: memref<544x64xbf16, #tpu.memory_space<vmem>>, %arg4: memref<5x64xf32, #tpu.memory_space<vmem>>, %arg5: memref<128x128xf32, #tpu.memory_space<vmem>>) attributes {dimension_semantics = [#tpu.dimension_semantics<arbitrary>], iteration_bounds = array<i64: 1>, scalar_prefetch = 0 : i64, scratch_operands = 0 : i64, tpu.core_type = #tpu.core_type<tc>, window_params = [{pipeline_mode = #tpu.pipeline_mode<synchronous>, transform_indices = @transform_0, window_bounds = array<i64: 128, 1>}, {pipeline_mode = #tpu.pipeline_mode<synchronous>, transform_indices = @transform_1, window_bounds = array<i64: 3, 32>}, {pipeline_mode = #tpu.pipeline_mode<synchronous>, transform_indices = @transform_2, window_bounds = array<i64: 544, 64>}, {pipeline_mode = #tpu.pipeline_mode<synchronous>, transform_indices = @transform_3, window_bounds = array<i64: 5, 64>}, {pipeline_mode = #tpu.pipeline_mode<synchronous>, transform_indices = @transform_4, window_bounds = array<i64: 128, 128>}]} {
    %0 = tpu.iota {dimensions = array<i32: 0>} : vector<128x1xi32>
    %c64_i32 = arith.constant 64 : i32
    %c0_i32 = arith.constant 0 : i32
    %1 = arith.cmpi eq, %c64_i32, %c0_i32 : i32
    %c1_i32 = arith.constant 1 : i32
    %2 = arith.select %1, %c1_i32, %c64_i32 : i32
    %3 = vector.broadcast %2 : i32 to vector<128x1xi32>
    %4 = arith.remsi %0, %3 : vector<128x1xi32>
    %c0_i32_0 = arith.constant 0 : i32
    %5 = vector.broadcast %c0_i32_0 : i32 to vector<128x1xi32>
    %6 = arith.cmpi ne, %4, %5 : vector<128x1xi32>
    %c0_i32_1 = arith.constant 0 : i32
    %7 = vector.broadcast %c0_i32_1 : i32 to vector<128x1xi32>
    %8 = arith.cmpi slt, %4, %7 : vector<128x1xi32>
    %c0_i32_2 = arith.constant 0 : i32
    %9 = arith.cmpi slt, %2, %c0_i32_2 : i32
    %10 = vector.broadcast %9 : i1 to vector<128x1xi1>
    %11 = vector.broadcast %10 : vector<128x1xi1> to vector<128x1xi1>
    %12 = arith.xori %8, %11 : vector<128x1xi1>
    %13 = arith.andi %12, %6 : vector<128x1xi1>
    %14 = vector.broadcast %2 : i32 to vector<128x1xi32>
    %15 = arith.addi %4, %14 : vector<128x1xi32>
    %16 = arith.select %13, %15, %4 : vector<128x1xi1>, vector<128x1xi32>
    %c63_i32 = arith.constant 63 : i32
    %17 = vector.broadcast %c63_i32 : i32 to vector<128x1xi32>
    %18 = arith.cmpi slt, %16, %17 : vector<128x1xi32>
    %c1_i32_3 = arith.constant 1 : i32
    %19 = vector.broadcast %c1_i32_3 : i32 to vector<128x1xi32>
    %20 = arith.cmpi sge, %16, %19 : vector<128x1xi32>
    %c0 = arith.constant 0 : index
    %c0_4 = arith.constant 0 : index
    %21 = vector.load %arg1[%c0, %c0_4] : memref<128x1xf32, #tpu.memory_space<vmem>>, vector<128x1xf32>
    %c0_5 = arith.constant 0 : index
    %c0_6 = arith.constant 0 : index
    %22 = vector.load %arg4[%c0_5, %c0_6] : memref<5x64xf32, #tpu.memory_space<vmem>>, vector<5x64xf32>
    %c0_7 = arith.constant 0 : index
    %c0_8 = arith.constant 0 : index
    %23 = vector.load %arg2[%c0_7, %c0_8] : memref<3x32xf32, #tpu.memory_space<vmem>>, vector<3x32xf32>
    %c1_i32_9 = arith.constant 1 : i32
    %24 = tpu.dynamic_rotate %21 by %c1_i32_9 dim 0 : vector<128x1xf32>, i32 -> vector<128x1xf32>
    %cst = arith.constant 0.000000e+00 : f32
    %25 = vector.broadcast %cst : f32 to vector<128x1xf32>
    %26 = arith.select %20, %24, %25 : vector<128x1xi1>, vector<128x1xf32>
    %27 = vector.extract_strided_slice %23 {offsets = [0, 0], sizes = [1, 32], strides = [1, 1]} : vector<3x32xf32> to vector<1x32xf32>
    %28 = vector.broadcast %26 : vector<128x1xf32> to vector<128x32xf32>
    %29 = vector.broadcast %27 : vector<1x32xf32> to vector<128x32xf32>
    %30 = arith.mulf %28, %29 : vector<128x32xf32>
    %31 = vector.extract_strided_slice %23 {offsets = [1, 0], sizes = [1, 32], strides = [1, 1]} : vector<3x32xf32> to vector<1x32xf32>
    %32 = vector.broadcast %21 : vector<128x1xf32> to vector<128x32xf32>
    %33 = vector.broadcast %31 : vector<1x32xf32> to vector<128x32xf32>
    %34 = arith.mulf %32, %33 : vector<128x32xf32>
    %35 = arith.addf %30, %34 : vector<128x32xf32>
    %c127_i32 = arith.constant 127 : i32
    %36 = tpu.dynamic_rotate %21 by %c127_i32 dim 0 : vector<128x1xf32>, i32 -> vector<128x1xf32>
    %cst_10 = arith.constant 0.000000e+00 : f32
    %37 = vector.broadcast %cst_10 : f32 to vector<128x1xf32>
    %38 = arith.select %18, %36, %37 : vector<128x1xi1>, vector<128x1xf32>
    %39 = vector.extract_strided_slice %23 {offsets = [2, 0], sizes = [1, 32], strides = [1, 1]} : vector<3x32xf32> to vector<1x32xf32>
    %40 = vector.broadcast %38 : vector<128x1xf32> to vector<128x32xf32>
    %41 = vector.broadcast %39 : vector<1x32xf32> to vector<128x32xf32>
    %42 = arith.mulf %40, %41 : vector<128x32xf32>
    %43 = arith.addf %35, %42 : vector<128x32xf32>
    %44 = vector.extract_strided_slice %22 {offsets = [0, 0], sizes = [1, 32], strides = [1, 1]} : vector<5x64xf32> to vector<1x32xf32>
    %45 = vector.broadcast %44 : vector<1x32xf32> to vector<128x32xf32>
    %46 = arith.addf %43, %45 : vector<128x32xf32>
    %cst_11 = arith.constant 0.000000e+00 : f32
    %47 = vector.broadcast %cst_11 : f32 to vector<128x32xf32>
    %48 = arith.cmpf ogt, %46, %47 : vector<128x32xf32>
    %cst_12 = arith.constant 0.00999999977 : f32
    %49 = vector.broadcast %cst_12 : f32 to vector<128x32xf32>
    %50 = arith.mulf %49, %46 : vector<128x32xf32>
    %51 = arith.select %48, %46, %50 : vector<128x32xi1>, vector<128x32xf32>
    %c1_i32_13 = arith.constant 1 : i32
    %52 = tpu.dynamic_rotate %51 by %c1_i32_13 dim 0 : vector<128x32xf32>, i32 -> vector<128x32xf32>
    %cst_14 = arith.constant 0.000000e+00 : f32
    %53 = vector.broadcast %cst_14 : f32 to vector<128x32xf32>
    %54 = vector.shape_cast %20 : vector<128x1xi1> to vector<128x1xi1>
    %55 = vector.broadcast %54 : vector<128x1xi1> to vector<128x32xi1>
    %56 = arith.select %55, %52, %53 : vector<128x32xi1>, vector<128x32xf32>
    %c127_i32_15 = arith.constant 127 : i32
    %57 = tpu.dynamic_rotate %51 by %c127_i32_15 dim 0 : vector<128x32xf32>, i32 -> vector<128x32xf32>
    %cst_16 = arith.constant 0.000000e+00 : f32
    %58 = vector.broadcast %cst_16 : f32 to vector<128x32xf32>
    %59 = vector.shape_cast %18 : vector<128x1xi1> to vector<128x1xi1>
    %60 = vector.broadcast %59 : vector<128x1xi1> to vector<128x32xi1>
    %61 = arith.select %60, %57, %58 : vector<128x32xi1>, vector<128x32xf32>
    %62 = tpu.concatenate %56, %51, %61 in 1 : vector<128x32xf32>, vector<128x32xf32>, vector<128x32xf32> -> vector<128x96xf32>
    %63 = arith.truncf %62 : vector<128x96xf32> to vector<128x96xbf16>
    %c0_17 = arith.constant 0 : index
    %c0_18 = arith.constant 0 : index
    %64 = vector.load %arg3[%c0_17, %c0_18] : memref<544x64xbf16, #tpu.memory_space<vmem>>, vector<96x64xbf16>
    %cst_19 = arith.constant dense<0.000000e+00> : vector<128x64xf32>
    %65 = tpu.matmul %63, %64, %cst_19 {dimension_numbers = #tpu.dot_dimension_numbers<[1], [0], [0], [1], [0, 0, 1, 1], [], []>} : vector<128x96xbf16>, vector<96x64xbf16>, vector<128x64xf32> -> vector<128x64xf32>
    %66 = vector.extract_strided_slice %22 {offsets = [1, 0], sizes = [1, 64], strides = [1, 1]} : vector<5x64xf32> to vector<1x64xf32>
    %67 = vector.broadcast %66 : vector<1x64xf32> to vector<128x64xf32>
    %68 = arith.addf %65, %67 : vector<128x64xf32>
    %cst_20 = arith.constant 0.000000e+00 : f32
    %69 = vector.broadcast %cst_20 : f32 to vector<128x64xf32>
    %70 = arith.cmpf ogt, %68, %69 : vector<128x64xf32>
    %cst_21 = arith.constant 0.00999999977 : f32
    %71 = vector.broadcast %cst_21 : f32 to vector<128x64xf32>
    %72 = arith.mulf %71, %68 : vector<128x64xf32>
    %73 = arith.select %70, %68, %72 : vector<128x64xi1>, vector<128x64xf32>
    %c1_i32_22 = arith.constant 1 : i32
    %74 = tpu.dynamic_rotate %73 by %c1_i32_22 dim 0 : vector<128x64xf32>, i32 -> vector<128x64xf32>
    %cst_23 = arith.constant 0.000000e+00 : f32
    %75 = vector.broadcast %cst_23 : f32 to vector<128x64xf32>
    %76 = vector.shape_cast %20 : vector<128x1xi1> to vector<128x1xi1>
    %77 = vector.broadcast %76 : vector<128x1xi1> to vector<128x64xi1>
    %78 = arith.select %77, %74, %75 : vector<128x64xi1>, vector<128x64xf32>
    %c127_i32_24 = arith.constant 127 : i32
    %79 = tpu.dynamic_rotate %73 by %c127_i32_24 dim 0 : vector<128x64xf32>, i32 -> vector<128x64xf32>
    %cst_25 = arith.constant 0.000000e+00 : f32
    %80 = vector.broadcast %cst_25 : f32 to vector<128x64xf32>
    %81 = vector.shape_cast %18 : vector<128x1xi1> to vector<128x1xi1>
    %82 = vector.broadcast %81 : vector<128x1xi1> to vector<128x64xi1>
    %83 = arith.select %82, %79, %80 : vector<128x64xi1>, vector<128x64xf32>
    %84 = tpu.concatenate %78, %73, %83 in 1 : vector<128x64xf32>, vector<128x64xf32>, vector<128x64xf32> -> vector<128x192xf32>
    %85 = arith.truncf %84 : vector<128x192xf32> to vector<128x192xbf16>
    %c96 = arith.constant 96 : index
    %c0_26 = arith.constant 0 : index
    %86 = vector.load %arg3[%c96, %c0_26] : memref<544x64xbf16, #tpu.memory_space<vmem>>, vector<192x64xbf16>
    %cst_27 = arith.constant dense<0.000000e+00> : vector<128x64xf32>
    %87 = tpu.matmul %85, %86, %cst_27 {dimension_numbers = #tpu.dot_dimension_numbers<[1], [0], [0], [1], [0, 0, 1, 1], [], []>} : vector<128x192xbf16>, vector<192x64xbf16>, vector<128x64xf32> -> vector<128x64xf32>
    %88 = vector.extract_strided_slice %22 {offsets = [2, 0], sizes = [1, 64], strides = [1, 1]} : vector<5x64xf32> to vector<1x64xf32>
    %89 = vector.broadcast %88 : vector<1x64xf32> to vector<128x64xf32>
    %90 = arith.addf %87, %89 : vector<128x64xf32>
    %cst_28 = arith.constant 0.000000e+00 : f32
    %91 = vector.broadcast %cst_28 : f32 to vector<128x64xf32>
    %92 = arith.cmpf ogt, %90, %91 : vector<128x64xf32>
    %cst_29 = arith.constant 0.00999999977 : f32
    %93 = vector.broadcast %cst_29 : f32 to vector<128x64xf32>
    %94 = arith.mulf %93, %90 : vector<128x64xf32>
    %95 = arith.select %92, %90, %94 : vector<128x64xi1>, vector<128x64xf32>
    %c1_i32_30 = arith.constant 1 : i32
    %96 = tpu.dynamic_rotate %95 by %c1_i32_30 dim 0 : vector<128x64xf32>, i32 -> vector<128x64xf32>
    %cst_31 = arith.constant 0.000000e+00 : f32
    %97 = vector.broadcast %cst_31 : f32 to vector<128x64xf32>
    %98 = vector.shape_cast %20 : vector<128x1xi1> to vector<128x1xi1>
    %99 = vector.broadcast %98 : vector<128x1xi1> to vector<128x64xi1>
    %100 = arith.select %99, %96, %97 : vector<128x64xi1>, vector<128x64xf32>
    %c127_i32_32 = arith.constant 127 : i32
    %101 = tpu.dynamic_rotate %95 by %c127_i32_32 dim 0 : vector<128x64xf32>, i32 -> vector<128x64xf32>
    %cst_33 = arith.constant 0.000000e+00 : f32
    %102 = vector.broadcast %cst_33 : f32 to vector<128x64xf32>
    %103 = vector.shape_cast %18 : vector<128x1xi1> to vector<128x1xi1>
    %104 = vector.broadcast %103 : vector<128x1xi1> to vector<128x64xi1>
    %105 = arith.select %104, %101, %102 : vector<128x64xi1>, vector<128x64xf32>
    %106 = tpu.concatenate %100, %95, %105 in 1 : vector<128x64xf32>, vector<128x64xf32>, vector<128x64xf32> -> vector<128x192xf32>
    %107 = arith.truncf %106 : vector<128x192xf32> to vector<128x192xbf16>
    %c288 = arith.constant 288 : index
    %c0_34 = arith.constant 0 : index
    %108 = vector.load %arg3[%c288, %c0_34] : memref<544x64xbf16, #tpu.memory_space<vmem>>, vector<192x64xbf16>
    %cst_35 = arith.constant dense<0.000000e+00> : vector<128x64xf32>
    %109 = tpu.matmul %107, %108, %cst_35 {dimension_numbers = #tpu.dot_dimension_numbers<[1], [0], [0], [1], [0, 0, 1, 1], [], []>} : vector<128x192xbf16>, vector<192x64xbf16>, vector<128x64xf32> -> vector<128x64xf32>
    %110 = vector.extract_strided_slice %22 {offsets = [3, 0], sizes = [1, 64], strides = [1, 1]} : vector<5x64xf32> to vector<1x64xf32>
    %111 = vector.broadcast %110 : vector<1x64xf32> to vector<128x64xf32>
    %112 = arith.addf %109, %111 : vector<128x64xf32>
    %cst_36 = arith.constant 0.000000e+00 : f32
    %113 = vector.broadcast %cst_36 : f32 to vector<128x64xf32>
    %114 = arith.cmpf ogt, %112, %113 : vector<128x64xf32>
    %cst_37 = arith.constant 0.00999999977 : f32
    %115 = vector.broadcast %cst_37 : f32 to vector<128x64xf32>
    %116 = arith.mulf %115, %112 : vector<128x64xf32>
    %117 = arith.select %114, %112, %116 : vector<128x64xi1>, vector<128x64xf32>
    %118 = arith.truncf %117 : vector<128x64xf32> to vector<128x64xbf16>
    %c480 = arith.constant 480 : index
    %c0_38 = arith.constant 0 : index
    %119 = vector.load %arg3[%c480, %c0_38] : memref<544x64xbf16, #tpu.memory_space<vmem>>, vector<64x64xbf16>
    %cst_39 = arith.constant dense<0.000000e+00> : vector<128x64xf32>
    %120 = tpu.matmul %118, %119, %cst_39 {dimension_numbers = #tpu.dot_dimension_numbers<[1], [0], [0], [1], [0, 0, 1, 1], [], []>} : vector<128x64xbf16>, vector<64x64xbf16>, vector<128x64xf32> -> vector<128x64xf32>
    %121 = vector.extract_strided_slice %22 {offsets = [4, 0], sizes = [1, 64], strides = [1, 1]} : vector<5x64xf32> to vector<1x64xf32>
    %122 = vector.broadcast %121 : vector<1x64xf32> to vector<128x64xf32>
    %123 = arith.addf %120, %122 : vector<128x64xf32>
    %cst_40 = arith.constant 0.000000e+00 : f32
    %124 = vector.broadcast %cst_40 : f32 to vector<128x64xf32>
    %125 = arith.cmpf ogt, %123, %124 : vector<128x64xf32>
    %cst_41 = arith.constant 0.00999999977 : f32
    %126 = vector.broadcast %cst_41 : f32 to vector<128x64xf32>
    %127 = arith.mulf %126, %123 : vector<128x64xf32>
    %128 = arith.select %125, %123, %127 : vector<128x64xi1>, vector<128x64xf32>
    %cst_42 = arith.constant 0.000000e+00 : f32
    %129 = vector.broadcast %cst_42 : f32 to vector<128x64xf32>
    %130 = tpu.concatenate %128, %129 in 1 : vector<128x64xf32>, vector<128x64xf32> -> vector<128x128xf32>
    %c0_43 = arith.constant 0 : index
    %c0_44 = arith.constant 0 : index
    %131 = vector.load %arg5[%c0_43, %c0_44] : memref<128x128xf32, #tpu.memory_space<vmem>>, vector<128x128xf32>
    tpu.vector_store %arg5[%c0_43, %c0_44], %130 {strides = array<i32>} : memref<128x128xf32, #tpu.memory_space<vmem>>, vector<128x128xf32>,
    return
  }
  func.func @transform_0(%arg0: i32) -> (i32, i32) {
    %c0_i32 = arith.constant 0 : i32
    %c0_i32_0 = arith.constant 0 : i32
    %c0_i32_1 = arith.constant 0 : i32
    return %c0_i32, %c0_i32_0 : i32, i32
  }
  func.func @transform_1(%arg0: i32) -> (i32, i32) {
    %c0_i32 = arith.constant 0 : i32
    %c0_i32_0 = arith.constant 0 : i32
    %c0_i32_1 = arith.constant 0 : i32
    return %c0_i32, %c0_i32_0 : i32, i32
  }
  func.func @transform_2(%arg0: i32) -> (i32, i32) {
    %c0_i32 = arith.constant 0 : i32
    %c0_i32_0 = arith.constant 0 : i32
    %c0_i32_1 = arith.constant 0 : i32
    return %c0_i32, %c0_i32_0 : i32, i32
  }
  func.func @transform_3(%arg0: i32) -> (i32, i32) {
    %c0_i32 = arith.constant 0 : i32
    %c0_i32_0 = arith.constant 0 : i32
    %c0_i32_1 = arith.constant 0 : i32
    return %c0_i32, %c0_i32_0 : i32, i32
  }
  func.func @transform_4(%arg0: i32) -> (i32, i32) {
    %c0_i32 = arith.constant 0 : i32
    %c0_i32_0 = arith.constant 0 : i32
    %c0_i32_1 = arith.constant 0 : i32
    return %c0_i32, %c0_i32_0 : i32, i32
  }
}

</mosaic_0001>

<llo_original>
// kernel: prototype_forward.1
$region0: #{prototype_forward.1}
  #allocation0 [shape = 'u32[]', space=smem, size = 0x4, offset = 0x4, fixed_abs, tag = 'smem constant byte address 0x4 - core index']
  #allocation1 [shape = 'u32[144,128]{1,0:T(1,128)}', space=vmem, size = 0x12000, scoped, tag = 'internal scratch']
  %s0 = inlined_call_operand.vmem [shape: f32[128,1], index: 0, kind: input, shape index: {}]
  %s1 = inlined_call_operand.vmem [shape: f32[3,32], index: 1, kind: input, shape index: {}]
  %s2 = inlined_call_operand.vmem [shape: bf16[544,64], index: 2, kind: input, shape index: {}]
  %s3 = inlined_call_operand.vmem [shape: f32[5,64], index: 3, kind: input, shape index: {}]
  %s4 = inlined_call_operand.vmem [shape: f32[128,128], index: 4, kind: output, shape index: {}]
  %s5 = sld [smem:[#allocation0]]
  $region26: #{prototype_forward.1} parent=0
    _
  %s7 = ssub.s32 1, %s5
  %s8 = scalar_select 0, %s7, %s5
  // Predicated region
  $region2: #{prototype_forward.1} parent=0 // pred_check
    _
  $region3: #{prototype_forward.1} parent=0 // pred_check_branch
    %10 = sbr.rel (0) target = $region5
  $region4: #{prototype_forward.1} parent=0 // pred_region
    _
  $region5: #{prototype_forward.1} parent=0 // pred_fallthru
    _
  // Predicated region
  $region6: #{prototype_forward.1} parent=0 // pred_check
    _
  $region7: #{prototype_forward.1} parent=0 // pred_check_branch
    %12 = sbr.rel (0) target = $region9
  $region8: #{prototype_forward.1} parent=0 // pred_region
    _
  $region9: #{prototype_forward.1} parent=0 // pred_fallthru
    _
  // Predicated region
  $region10: #{prototype_forward.1} parent=0 // pred_check
    _
  $region11: #{prototype_forward.1} parent=0 // pred_check_branch
    %14 = sbr.rel (0) target = $region13
  $region12: #{prototype_forward.1} parent=0 // pred_region
    _
  $region13: #{prototype_forward.1} parent=0 // pred_fallthru
    _
  // Predicated region
  $region14: #{prototype_forward.1} parent=0 // pred_check
    _
  $region15: #{prototype_forward.1} parent=0 // pred_check_branch
    %16 = sbr.rel (0) target = $region17
  $region16: #{prototype_forward.1} parent=0 // pred_region
    _
  $region17: #{prototype_forward.1} parent=0 // pred_fallthru
    _
  %v18 = vlaneseq
  %v19 = vshrl.u32 %v18, 7
  %v20 = vadd.s32 %v19, 8
  %v21 = vadd.s32 %v19, 16
  %v22 = vadd.s32 %v19, 24
  %v23 = vadd.s32 %v19, 32
  %v24 = vadd.s32 %v19, 40
  %v25 = vadd.s32 %v19, 48
  %v26 = vadd.s32 %v19, 56
  %v27 = vadd.s32 %v19, 64
  %v28 = vadd.s32 %v19, 72
  %v29 = vadd.s32 %v19, 80
  %v30 = vadd.s32 %v19, 88
  %v31 = vadd.s32 %v19, 96
  %v32 = vadd.s32 %v19, 104
  %v33 = vadd.s32 %v19, 112
  %v34 = vadd.s32 %v19, 120
  %vm35 = vcmp.lt.s32.totalorder %v19, 0
  %v36 = vsub.s32 0, %v19
  %v37 = vsel %vm35, %v36, %v19
  %v38 = vshrl.u32 %v37, 6
  %v39 = vand.u32 %v37, 63
  %v40 = vsub.s32 0, %v39
  %v41 = vsel %vm35, %v40, %v39
  %vm42 = vcmp.lt.s32.totalorder %v20, 0
  %v43 = vsub.s32 0, %v20
  %v44 = vsel %vm42, %v43, %v20
  %v45 = vshrl.u32 %v44, 6
  %v46 = vand.u32 %v44, 63
  %v47 = vsub.s32 0, %v46
  %v48 = vsel %vm42, %v47, %v46
  %vm49 = vcmp.lt.s32.totalorder %v21, 0
  %v50 = vsub.s32 0, %v21
  %v51 = vsel %vm49, %v50, %v21
  %v52 = vshrl.u32 %v51, 6
  %v53 = vand.u32 %v51, 63
  %v54 = vsub.s32 0, %v53
  %v55 = vsel %vm49, %v54, %v53
  %vm56 = vcmp.lt.s32.totalorder %v22, 0
  %v57 = vsub.s32 0, %v22
  %v58 = vsel %vm56, %v57, %v22
  %v59 = vshrl.u32 %v58, 6
  %v60 = vand.u32 %v58, 63
  %v61 = vsub.s32 0, %v60
  %v62 = vsel %vm56, %v61, %v60
  %vm63 = vcmp.lt.s32.totalorder %v23, 0
  %v64 = vsub.s32 0, %v23
  %v65 = vsel %vm63, %v64, %v23
  %v66 = vshrl.u32 %v65, 6
  %v67 = vand.u32 %v65, 63
  %v68 = vsub.s32 0, %v67
  %v69 = vsel %vm63, %v68, %v67
  %vm70 = vcmp.lt.s32.totalorder %v24, 0
  %v71 = vsub.s32 0, %v24
  %v72 = vsel %vm70, %v71, %v24
  %v73 = vshrl.u32 %v72, 6
  %v74 = vand.u32 %v72, 63
  %v75 = vsub.s32 0, %v74
  %v76 = vsel %vm70, %v75, %v74
  %vm77 = vcmp.lt.s32.totalorder %v25, 0
  %v78 = vsub.s32 0, %v25
  %v79 = vsel %vm77, %v78, %v25
  %v80 = vshrl.u32 %v79, 6
  %v81 = vand.u32 %v79, 63
  %v82 = vsub.s32 0, %v81
  %v83 = vsel %vm77, %v82, %v81
  %vm84 = vcmp.lt.s32.totalorder %v26, 0
  %v85 = vsub.s32 0, %v26
  %v86 = vsel %vm84, %v85, %v26
  %v87 = vshrl.u32 %v86, 6
  %v88 = vand.u32 %v86, 63
  %v89 = vsub.s32 0, %v88
  %v90 = vsel %vm84, %v89, %v88
  %vm91 = vcmp.lt.s32.totalorder %v27, 0
  %v92 = vsub.s32 0, %v27
  %v93 = vsel %vm91, %v92, %v27
  %v94 = vshrl.u32 %v93, 6
  %v95 = vand.u32 %v93, 63
  %v96 = vsub.s32 0, %v95
  %v97 = vsel %vm91, %v96, %v95
  %vm98 = vcmp.lt.s32.totalorder %v28, 0
  %v99 = vsub.s32 0, %v28
  %v100 = vsel %vm98, %v99, %v28
  %v101 = vshrl.u32 %v100, 6
  %v102 = vand.u32 %v100, 63
  %v103 = vsub.s32 0, %v102
  %v104 = vsel %vm98, %v103, %v102
  %vm105 = vcmp.lt.s32.totalorder %v29, 0
  %v106 = vsub.s32 0, %v29
  %v107 = vsel %vm105, %v106, %v29
  %v108 = vshrl.u32 %v107, 6
  %v109 = vand.u32 %v107, 63
  %v110 = vsub.s32 0, %v109
  %v111 = vsel %vm105, %v110, %v109
  %vm112 = vcmp.lt.s32.totalorder %v30, 0
  %v113 = vsub.s32 0, %v30
  %v114 = vsel %vm112, %v113, %v30
  %v115 = vshrl.u32 %v114, 6
  %v116 = vand.u32 %v114, 63
  %v117 = vsub.s32 0, %v116
  %v118 = vsel %vm112, %v117, %v116
  %vm119 = vcmp.lt.s32.totalorder %v31, 0
  %v120 = vsub.s32 0, %v31
  %v121 = vsel %vm119, %v120, %v31
  %v122 = vshrl.u32 %v121, 6
  %v123 = vand.u32 %v121, 63
  %v124 = vsub.s32 0, %v123
  %v125 = vsel %vm119, %v124, %v123
  %vm126 = vcmp.lt.s32.totalorder %v32, 0
  %v127 = vsub.s32 0, %v32
  %v128 = vsel %vm126, %v127, %v32
  %v129 = vshrl.u32 %v128, 6
  %v130 = vand.u32 %v128, 63
  %v131 = vsub.s32 0, %v130
  %v132 = vsel %vm126, %v131, %v130
  %vm133 = vcmp.lt.s32.totalorder %v33, 0
  %v134 = vsub.s32 0, %v33
  %v135 = vsel %vm133, %v134, %v33
  %v136 = vshrl.u32 %v135, 6
  %v137 = vand.u32 %v135, 63
  %v138 = vsub.s32 0, %v137
  %v139 = vsel %vm133, %v138, %v137
  %vm140 = vcmp.lt.s32.totalorder %v34, 0
  %v141 = vsub.s32 0, %v34
  %v142 = vsel %vm140, %v141, %v34
  %v143 = vshrl.u32 %v142, 6
  %v144 = vand.u32 %v142, 63
  %v145 = vsub.s32 0, %v144
  %v146 = vsel %vm140, %v145, %v144
  %vm147 = vcmp.ne.s32.totalorder %v41, 0
  %vm148 = vcmp.ne.s32.totalorder %v48, 0
  %vm149 = vcmp.ne.s32.totalorder %v55, 0
  %vm150 = vcmp.ne.s32.totalorder %v62, 0
  %vm151 = vcmp.ne.s32.totalorder %v69, 0
  %vm152 = vcmp.ne.s32.totalorder %v76, 0
  %vm153 = vcmp.ne.s32.totalorder %v83, 0
  %vm154 = vcmp.ne.s32.totalorder %v90, 0
  %vm155 = vcmp.ne.s32.totalorder %v97, 0
  %vm156 = vcmp.ne.s32.totalorder %v104, 0
  %vm157 = vcmp.ne.s32.totalorder %v111, 0
  %vm158 = vcmp.ne.s32.totalorder %v118, 0
  %vm159 = vcmp.ne.s32.totalorder %v125, 0
  %vm160 = vcmp.ne.s32.totalorder %v132, 0
  %vm161 = vcmp.ne.s32.totalorder %v139, 0
  %vm162 = vcmp.ne.s32.totalorder %v146, 0
  %vm163 = vcmp.lt.s32.totalorder %v41, 0
  %vm164 = vcmp.lt.s32.totalorder %v48, 0
  %vm165 = vcmp.lt.s32.totalorder %v55, 0
  %vm166 = vcmp.lt.s32.totalorder %v62, 0
  %vm167 = vcmp.lt.s32.totalorder %v69, 0
  %vm168 = vcmp.lt.s32.totalorder %v76, 0
  %vm169 = vcmp.lt.s32.totalorder %v83, 0
  %vm170 = vcmp.lt.s32.totalorder %v90, 0
  %vm171 = vcmp.lt.s32.totalorder %v97, 0
  %vm172 = vcmp.lt.s32.totalorder %v104, 0
  %vm173 = vcmp.lt.s32.totalorder %v111, 0
  %vm174 = vcmp.lt.s32.totalorder %v118, 0
  %vm175 = vcmp.lt.s32.totalorder %v125, 0
  %vm176 = vcmp.lt.s32.totalorder %v132, 0
  %vm177 = vcmp.lt.s32.totalorder %v139, 0
  %vm178 = vcmp.lt.s32.totalorder %v146, 0
  %vm179 = vmand %vm163, %vm147
  %vm180 = vmand %vm164, %vm148
  %vm181 = vmand %vm165, %vm149
  %vm182 = vmand %vm166, %vm150
  %vm183 = vmand %vm167, %vm151
  %vm184 = vmand %vm168, %vm152
  %vm185 = vmand %vm169, %vm153
  %vm186 = vmand %vm170, %vm154
  %vm187 = vmand %vm171, %vm155
  %vm188 = vmand %vm172, %vm156
  %vm189 = vmand %vm173, %vm157
  %vm190 = vmand %vm174, %vm158
  %vm191 = vmand %vm175, %vm159
  %vm192 = vmand %vm176, %vm160
  %vm193 = vmand %vm177, %vm161
  %vm194 = vmand %vm178, %vm162
  %v195 = vadd.s32 %v41, 64
  %v196 = vadd.s32 %v48, 64
  %v197 = vadd.s32 %v55, 64
  %v198 = vadd.s32 %v62, 64
  %v199 = vadd.s32 %v69, 64
  %v200 = vadd.s32 %v76, 64
  %v201 = vadd.s32 %v83, 64
  %v202 = vadd.s32 %v90, 64
  %v203 = vadd.s32 %v97, 64
  %v204 = vadd.s32 %v104, 64
  %v205 = vadd.s32 %v111, 64
  %v206 = vadd.s32 %v118, 64
  %v207 = vadd.s32 %v125, 64
  %v208 = vadd.s32 %v132, 64
  %v209 = vadd.s32 %v139, 64
  %v210 = vadd.s32 %v146, 64
  %v211 = vsel %vm179, %v195, %v41
  %v212 = vsel %vm180, %v196, %v48
  %v213 = vsel %vm181, %v197, %v55
  %v214 = vsel %vm182, %v198, %v62
  %v215 = vsel %vm183, %v199, %v69
  %v216 = vsel %vm184, %v200, %v76
  %v217 = vsel %vm185, %v201, %v83
  %v218 = vsel %vm186, %v202, %v90
  %v219 = vsel %vm187, %v203, %v97
  %v220 = vsel %vm188, %v204, %v104
  %v221 = vsel %vm189, %v205, %v111
  %v222 = vsel %vm190, %v206, %v118
  %v223 = vsel %vm191, %v207, %v125
  %v224 = vsel %vm192, %v208, %v132
  %v225 = vsel %vm193, %v209, %v139
  %v226 = vsel %vm194, %v210, %v146
  %vm227 = vcmp.lt.s32.totalorder %v211, 63
  %vm228 = vcmp.lt.s32.totalorder %v212, 63
  %vm229 = vcmp.lt.s32.totalorder %v213, 63
  %vm230 = vcmp.lt.s32.totalorder %v214, 63
  %vm231 = vcmp.lt.s32.totalorder %v215, 63
  %vm232 = vcmp.lt.s32.totalorder %v216, 63
  %vm233 = vcmp.lt.s32.totalorder %v217, 63
  %vm234 = vcmp.lt.s32.totalorder %v218, 63
  %vm235 = vcmp.lt.s32.totalorder %v219, 63
  %vm236 = vcmp.lt.s32.totalorder %v220, 63
  %vm237 = vcmp.lt.s32.totalorder %v221, 63
  %vm238 = vcmp.lt.s32.totalorder %v222, 63
  %vm239 = vcmp.lt.s32.totalorder %v223, 63
  %vm240 = vcmp.lt.s32.totalorder %v224, 63
  %vm241 = vcmp.lt.s32.totalorder %v225, 63
  %vm242 = vcmp.lt.s32.totalorder %v226, 63
  %vm243 = vcmp.ge.s32.totalorder %v211, 1
  %vm244 = vcmp.ge.s32.totalorder %v212, 1
  %vm245 = vcmp.ge.s32.totalorder %v213, 1
  %vm246 = vcmp.ge.s32.totalorder %v214, 1
  %vm247 = vcmp.ge.s32.totalorder %v215, 1
  %vm248 = vcmp.ge.s32.totalorder %v216, 1
  %vm249 = vcmp.ge.s32.totalorder %v217, 1
  %vm250 = vcmp.ge.s32.totalorder %v218, 1
  %vm251 = vcmp.ge.s32.totalorder %v219, 1
  %vm252 = vcmp.ge.s32.totalorder %v220, 1
  %vm253 = vcmp.ge.s32.totalorder %v221, 1
  %vm254 = vcmp.ge.s32.totalorder %v222, 1
  %vm255 = vcmp.ge.s32.totalorder %v223, 1
  %vm256 = vcmp.ge.s32.totalorder %v224, 1
  %vm257 = vcmp.ge.s32.totalorder %v225, 1
  %vm258 = vcmp.ge.s32.totalorder %v226, 1
  %v259 = vld [vmem:[%s0] sm:$0xff]
  %v260 = vld [vmem:[%s0 + $0x8] sm:$0xff]
  %v261 = vld [vmem:[%s0 + $0x10] sm:$0xff]
  %v262 = vld [vmem:[%s0 + $0x18] sm:$0xff]
  %v263 = vld [vmem:[%s0 + $0x20] sm:$0xff]
  %v264 = vld [vmem:[%s0 + $0x28] sm:$0xff]
  %v265 = vld [vmem:[%s0 + $0x30] sm:$0xff]
  %v266 = vld [vmem:[%s0 + $0x38] sm:$0xff]
  %v267 = vld [vmem:[%s0 + $0x40] sm:$0xff]
  %v268 = vld [vmem:[%s0 + $0x48] sm:$0xff]
  %v269 = vld [vmem:[%s0 + $0x50] sm:$0xff]
  %v270 = vld [vmem:[%s0 + $0x58] sm:$0xff]
  %v271 = vld [vmem:[%s0 + $0x60] sm:$0xff]
  %v272 = vld [vmem:[%s0 + $0x68] sm:$0xff]
  %v273 = vld [vmem:[%s0 + $0x70] sm:$0xff]
  %v274 = vld [vmem:[%s0 + $0x78] sm:$0xff]
  %v275 = vld [vmem:[%s3] sm:$0x1f]
  %v276 = vld [vmem:[%s1] sm:$0x7]
  %v277 = vrot.slane %v259, 7
  %v278 = vrot.slane %v260, 7
  %v279 = vrot.slane %v261, 7
  %v280 = vrot.slane %v262, 7
  %v281 = vrot.slane %v263, 7
  %v282 = vrot.slane %v264, 7
  %v283 = vrot.slane %v265, 7
  %v284 = vrot.slane %v266, 7
  %v285 = vrot.slane %v267, 7
  %v286 = vrot.slane %v268, 7
  %v287 = vrot.slane %v269, 7
  %v288 = vrot.slane %v270, 7
  %v289 = vrot.slane %v271, 7
  %v290 = vrot.slane %v272, 7
  %v291 = vrot.slane %v273, 7
  %v292 = vrot.slane %v274, 7
  %vm293 = vcmp.lt.s32.totalorder %v19, 1
  %v294 = vsel %vm293, %v291, %v292
  %v295 = vsel %vm293, %v290, %v291
  %v296 = vsel %vm293, %v289, %v290
  %v297 = vsel %vm293, %v288, %v289
  %v298 = vsel %vm293, %v287, %v288
  %v299 = vsel %vm293, %v286, %v287
  %v300 = vsel %vm293, %v285, %v286
  %v301 = vsel %vm293, %v284, %v285
  %v302 = vsel %vm293, %v283, %v284
  %v303 = vsel %vm293, %v282, %v283
  %v304 = vsel %vm293, %v281, %v282
  %v305 = vsel %vm293, %v280, %v281
  %v306 = vsel %vm293, %v279, %v280
  %v307 = vsel %vm293, %v278, %v279
  %v308 = vsel %vm293, %v277, %v278
  %v309 = vsel %vm293, %v292, %v277
  %v310 = vsel %vm243, %v309, 0.0
  %v311 = vsel %vm244, %v308, 0.0
  %v312 = vsel %vm245, %v307, 0.0
  %v313 = vsel %vm246, %v306, 0.0
  %v314 = vsel %vm247, %v305, 0.0
  %v315 = vsel %vm248, %v304, 0.0
  %v316 = vsel %vm249, %v303, 0.0
  %v317 = vsel %vm250, %v302, 0.0
  %v318 = vsel %vm251, %v301, 0.0
  %v319 = vsel %vm252, %v300, 0.0
  %v320 = vsel %vm253, %v299, 0.0
  %v321 = vsel %vm254, %v298, 0.0
  %v322 = vsel %vm255, %v297, 0.0
  %v323 = vsel %vm256, %v296, 0.0
  %v324 = vsel %vm257, %v295, 0.0
  %v325 = vsel %vm258, %v294, 0.0
  %327 = vset.pattern.permute.xlu0 0
  %328 = vperm.xlu0 %327, %v310
  %v329 = vpop.permute.xlu0 %328
  %332 = vset.pattern.permute.xlu0 0
  %333 = vperm.xlu0 %332, %v311
  %v334 = vpop.permute.xlu0 %333
  %337 = vset.pattern.permute.xlu0 0
  %338 = vperm.xlu0 %337, %v312
  %v339 = vpop.permute.xlu0 %338
  %342 = vset.pattern.permute.xlu0 0
  %343 = vperm.xlu0 %342, %v313
  %v344 = vpop.permute.xlu0 %343
  %347 = vset.pattern.permute.xlu0 0
  %348 = vperm.xlu0 %347, %v314
  %v349 = vpop.permute.xlu0 %348
  %352 = vset.pattern.permute.xlu0 0
  %353 = vperm.xlu0 %352, %v315
  %v354 = vpop.permute.xlu0 %353
  %357 = vset.pattern.permute.xlu0 0
  %358 = vperm.xlu0 %357, %v316
  %v359 = vpop.permute.xlu0 %358
  %362 = vset.pattern.permute.xlu0 0
  %363 = vperm.xlu0 %362, %v317
  %v364 = vpop.permute.xlu0 %363
  %367 = vset.pattern.permute.xlu0 0
  %368 = vperm.xlu0 %367, %v318
  %v369 = vpop.permute.xlu0 %368
  %372 = vset.pattern.permute.xlu0 0
  %373 = vperm.xlu0 %372, %v319
  %v374 = vpop.permute.xlu0 %373
  %377 = vset.pattern.permute.xlu0 0
  %378 = vperm.xlu0 %377, %v320
  %v379 = vpop.permute.xlu0 %378
  %382 = vset.pattern.permute.xlu0 0
  %383 = vperm.xlu0 %382, %v321
  %v384 = vpop.permute.xlu0 %383
  %387 = vset.pattern.permute.xlu0 0
  %388 = vperm.xlu0 %387, %v322
  %v389 = vpop.permute.xlu0 %388
  %392 = vset.pattern.permute.xlu0 0
  %393 = vperm.xlu0 %392, %v323
  %v394 = vpop.permute.xlu0 %393
  %397 = vset.pattern.permute.xlu0 0
  %398 = vperm.xlu0 %397, %v324
  %v399 = vpop.permute.xlu0 %398
  %402 = vset.pattern.permute.xlu0 0
  %403 = vperm.xlu0 %402, %v325
  %v404 = vpop.permute.xlu0 %403
  %v406 = vlaneseq
  %v407 = vshrl.u32 %v406, 7
  %v408 = vsub.s32 0, %v407
  %v409 = vrot.slane %v276, %v408
  %v410 = vmul.f32 %v329, %v409
  %v411 = vmul.f32 %v334, %v409
  %v412 = vmul.f32 %v339, %v409
  %v413 = vmul.f32 %v344, %v409
  %v414 = vmul.f32 %v349, %v409
  %v415 = vmul.f32 %v354, %v409
  %v416 = vmul.f32 %v359, %v409
  %v417 = vmul.f32 %v364, %v409
  %v418 = vmul.f32 %v369, %v409
  %v419 = vmul.f32 %v374, %v409
  %v420 = vmul.f32 %v379, %v409
  %v421 = vmul.f32 %v384, %v409
  %v422 = vmul.f32 %v389, %v409
  %v423 = vmul.f32 %v394, %v409
  %v424 = vmul.f32 %v399, %v409
  %v425 = vmul.f32 %v404, %v409
  %427 = vset.pattern.permute.xlu0 0
  %428 = vperm.xlu0 %427, %v259
  %v429 = vpop.permute.xlu0 %428
  %432 = vset.pattern.permute.xlu0 0
  %433 = vperm.xlu0 %432, %v260
  %v434 = vpop.permute.xlu0 %433
  %437 = vset.pattern.permute.xlu0 0
  %438 = vperm.xlu0 %437, %v261
  %v439 = vpop.permute.xlu0 %438
  %442 = vset.pattern.permute.xlu0 0
  %443 = vperm.xlu0 %442, %v262
  %v444 = vpop.permute.xlu0 %443
  %447 = vset.pattern.permute.xlu0 0
  %448 = vperm.xlu0 %447, %v263
  %v449 = vpop.permute.xlu0 %448
  %452 = vset.pattern.permute.xlu0 0
  %453 = vperm.xlu0 %452, %v264
  %v454 = vpop.permute.xlu0 %453
  %457 = vset.pattern.permute.xlu0 0
  %458 = vperm.xlu0 %457, %v265
  %v459 = vpop.permute.xlu0 %458
  %462 = vset.pattern.permute.xlu0 0
  %463 = vperm.xlu0 %462, %v266
  %v464 = vpop.permute.xlu0 %463
  %467 = vset.pattern.permute.xlu0 0
  %468 = vperm.xlu0 %467, %v267
  %v469 = vpop.permute.xlu0 %468
  %472 = vset.pattern.permute.xlu0 0
  %473 = vperm.xlu0 %472, %v268
  %v474 = vpop.permute.xlu0 %473
  %477 = vset.pattern.permute.xlu0 0
  %478 = vperm.xlu0 %477, %v269
  %v479 = vpop.permute.xlu0 %478
  %482 = vset.pattern.permute.xlu0 0
  %483 = vperm.xlu0 %482, %v270
  %v484 = vpop.permute.xlu0 %483
  %487 = vset.pattern.permute.xlu0 0
  %488 = vperm.xlu0 %487, %v271
  %v489 = vpop.permute.xlu0 %488
  %492 = vset.pattern.permute.xlu0 0
  %493 = vperm.xlu0 %492, %v272
  %v494 = vpop.permute.xlu0 %493
  %497 = vset.pattern.permute.xlu0 0
  %498 = vperm.xlu0 %497, %v273
  %v499 = vpop.permute.xlu0 %498
  %502 = vset.pattern.permute.xlu0 0
  %503 = vperm.xlu0 %502, %v274
  %v504 = vpop.permute.xlu0 %503
  %v506 = vlaneseq
  %v507 = vshrl.u32 %v506, 7
  %v508 = vsub.s32 1, %v507
  %v509 = vrot.slane %v276, %v508
  %v510 = vmul.f32 %v429, %v509
  %v511 = vmul.f32 %v434, %v509
  %v512 = vmul.f32 %v439, %v509
  %v513 = vmul.f32 %v444, %v509
  %v514 = vmul.f32 %v449, %v509
  %v515 = vmul.f32 %v454, %v509
  %v516 = vmul.f32 %v459, %v509
  %v517 = vmul.f32 %v464, %v509
  %v518 = vmul.f32 %v469, %v509
  %v519 = vmul.f32 %v474, %v509
  %v520 = vmul.f32 %v479, %v509
  %v521 = vmul.f32 %v484, %v509
  %v522 = vmul.f32 %v489, %v509
  %v523 = vmul.f32 %v494, %v509
  %v524 = vmul.f32 %v499, %v509
  %v525 = vmul.f32 %v504, %v509
  %v526 = vadd.f32 %v410, %v510
  %v527 = vadd.f32 %v411, %v511
  %v528 = vadd.f32 %v412, %v512
  %v529 = vadd.f32 %v413, %v513
  %v530 = vadd.f32 %v414, %v514
  %v531 = vadd.f32 %v415, %v515
  %v532 = vadd.f32 %v416, %v516
  %v533 = vadd.f32 %v417, %v517
  %v534 = vadd.f32 %v418, %v518
  %v535 = vadd.f32 %v419, %v519
  %v536 = vadd.f32 %v420, %v520
  %v537 = vadd.f32 %v421, %v521
  %v538 = vadd.f32 %v422, %v522
  %v539 = vadd.f32 %v423, %v523
  %v540 = vadd.f32 %v424, %v524
  %v541 = vadd.f32 %v425, %v525
  %v542 = vrot.slane %v259, 1
  %v543 = vrot.slane %v260, 1
  %v544 = vrot.slane %v261, 1
  %v545 = vrot.slane %v262, 1
  %v546 = vrot.slane %v263, 1
  %v547 = vrot.slane %v264, 1
  %v548 = vrot.slane %v265, 1
  %v549 = vrot.slane %v266, 1
  %v550 = vrot.slane %v267, 1
  %v551 = vrot.slane %v268, 1
  %v552 = vrot.slane %v269, 1
  %v553 = vrot.slane %v270, 1
  %v554 = vrot.slane %v271, 1
  %v555 = vrot.slane %v272, 1
  %v556 = vrot.slane %v273, 1
  %v557 = vrot.slane %v274, 1
  %vm558 = vcmp.lt.s32.totalorder %v19, 7
  %v559 = vsel %vm558, %v556, %v557
  %v560 = vsel %vm558, %v555, %v556
  %v561 = vsel %vm558, %v554, %v555
  %v562 = vsel %vm558, %v553, %v554
  %v563 = vsel %vm558, %v552, %v553
  %v564 = vsel %vm558, %v551, %v552
  %v565 = vsel %vm558, %v550, %v551
  %v566 = vsel %vm558, %v549, %v550
  %v567 = vsel %vm558, %v548, %v549
  %v568 = vsel %vm558, %v547, %v548
  %v569 = vsel %vm558, %v546, %v547
  %v570 = vsel %vm558, %v545, %v546
  %v571 = vsel %vm558, %v544, %v545
  %v572 = vsel %vm558, %v543, %v544
  %v573 = vsel %vm558, %v542, %v543
  %v574 = vsel %vm558, %v557, %v542
  %v575 = vsel %vm227, %v573, 0.0
  %v576 = vsel %vm228, %v572, 0.0
  %v577 = vsel %vm229, %v571, 0.0
  %v578 = vsel %vm230, %v570, 0.0
  %v579 = vsel %vm231, %v569, 0.0
  %v580 = vsel %vm232, %v568, 0.0
  %v581 = vsel %vm233, %v567, 0.0
  %v582 = vsel %vm234, %v566, 0.0
  %v583 = vsel %vm235, %v565, 0.0
  %v584 = vsel %vm236, %v564, 0.0
  %v585 = vsel %vm237, %v563, 0.0
  %v586 = vsel %vm238, %v562, 0.0
  %v587 = vsel %vm239, %v561, 0.0
  %v588 = vsel %vm240, %v560, 0.0
  %v589 = vsel %vm241, %v559, 0.0
  %v590 = vsel %vm242, %v574, 0.0
  %592 = vset.pattern.permute.xlu0 0
  %593 = vperm.xlu0 %592, %v575
  %v594 = vpop.permute.xlu0 %593
  %597 = vset.pattern.permute.xlu0 0
  %598 = vperm.xlu0 %597, %v576
  %v599 = vpop.permute.xlu0 %598
  %602 = vset.pattern.permute.xlu0 0
  %603 = vperm.xlu0 %602, %v577
  %v604 = vpop.permute.xlu0 %603
  %607 = vset.pattern.permute.xlu0 0
  %608 = vperm.xlu0 %607, %v578
  %v609 = vpop.permute.xlu0 %608
  %612 = vset.pattern.permute.xlu0 0
  %613 = vperm.xlu0 %612, %v579
  %v614 = vpop.permute.xlu0 %613
  %617 = vset.pattern.permute.xlu0 0
  %618 = vperm.xlu0 %617, %v580
  %v619 = vpop.permute.xlu0 %618
  %622 = vset.pattern.permute.xlu0 0
  %623 = vperm.xlu0 %622, %v581
  %v624 = vpop.permute.xlu0 %623
  %627 = vset.pattern.permute.xlu0 0
  %628 = vperm.xlu0 %627, %v582
  %v629 = vpop.permute.xlu0 %628
  %632 = vset.pattern.permute.xlu0 0
  %633 = vperm.xlu0 %632, %v583
  %v634 = vpop.permute.xlu0 %633
  %637 = vset.pattern.permute.xlu0 0
  %638 = vperm.xlu0 %637, %v584
  %v639 = vpop.permute.xlu0 %638
  %642 = vset.pattern.permute.xlu0 0
  %643 = vperm.xlu0 %642, %v585
  %v644 = vpop.permute.xlu0 %643
  %647 = vset.pattern.permute.xlu0 0
  %648 = vperm.xlu0 %647, %v586
  %v649 = vpop.permute.xlu0 %648
  %652 = vset.pattern.permute.xlu0 0
  %653 = vperm.xlu0 %652, %v587
  %v654 = vpop.permute.xlu0 %653
  %657 = vset.pattern.permute.xlu0 0
  %658 = vperm.xlu0 %657, %v588
  %v659 = vpop.permute.xlu0 %658
  %662 = vset.pattern.permute.xlu0 0
  %663 = vperm.xlu0 %662, %v589
  %v664 = vpop.permute.xlu0 %663
  %667 = vset.pattern.permute.xlu0 0
  %668 = vperm.xlu0 %667, %v590
  %v669 = vpop.permute.xlu0 %668
  %v671 = vlaneseq
  %v672 = vshrl.u32 %v671, 7
  %v673 = vsub.s32 2, %v672
  %v674 = vrot.slane %v276, %v673
  %v675 = vmul.f32 %v594, %v674
  %v676 = vmul.f32 %v599, %v674
  %v677 = vmul.f32 %v604, %v674
  %v678 = vmul.f32 %v609, %v674
  %v679 = vmul.f32 %v614, %v674
  %v680 = vmul.f32 %v619, %v674
  %v681 = vmul.f32 %v624, %v674
  %v682 = vmul.f32 %v629, %v674
  %v683 = vmul.f32 %v634, %v674
  %v684 = vmul.f32 %v639, %v674
  %v685 = vmul.f32 %v644, %v674
  %v686 = vmul.f32 %v649, %v674
  %v687 = vmul.f32 %v654, %v674
  %v688 = vmul.f32 %v659, %v674
  %v689 = vmul.f32 %v664, %v674
  %v690 = vmul.f32 %v669, %v674
  %v691 = vadd.f32 %v526, %v675
  %v692 = vadd.f32 %v527, %v676
  %v693 = vadd.f32 %v528, %v677
  %v694 = vadd.f32 %v529, %v678
  %v695 = vadd.f32 %v530, %v679
  %v696 = vadd.f32 %v531, %v680
  %v697 = vadd.f32 %v532, %v681
  %v698 = vadd.f32 %v533, %v682
  %v699 = vadd.f32 %v534, %v683
  %v700 = vadd.f32 %v535, %v684
  %v701 = vadd.f32 %v536, %v685
  %v702 = vadd.f32 %v537, %v686
  %v703 = vadd.f32 %v538, %v687
  %v704 = vadd.f32 %v539, %v688
  %v705 = vadd.f32 %v540, %v689
  %v706 = vadd.f32 %v541, %v690
  %v707 = vlaneseq
  %v708 = vshrl.u32 %v707, 7
  %v709 = vsub.s32 0, %v708
  %v710 = vrot.slane %v275, %v709
  %v711 = vadd.f32 %v691, %v710
  %v712 = vadd.f32 %v692, %v710
  %v713 = vadd.f32 %v693, %v710
  %v714 = vadd.f32 %v694, %v710
  %v715 = vadd.f32 %v695, %v710
  %v716 = vadd.f32 %v696, %v710
  %v717 = vadd.f32 %v697, %v710
  %v718 = vadd.f32 %v698, %v710
  %v719 = vadd.f32 %v699, %v710
  %v720 = vadd.f32 %v700, %v710
  %v721 = vadd.f32 %v701, %v710
  %v722 = vadd.f32 %v702, %v710
  %v723 = vadd.f32 %v703, %v710
  %v724 = vadd.f32 %v704, %v710
  %v725 = vadd.f32 %v705, %v710
  %v726 = vadd.f32 %v706, %v710
  %vm727 = vcmp.gt.f32.partialorder %v711, 0.0
  %vm728 = vcmp.gt.f32.partialorder %v712, 0.0
  %vm729 = vcmp.gt.f32.partialorder %v713, 0.0
  %vm730 = vcmp.gt.f32.partialorder %v714, 0.0
  %vm731 = vcmp.gt.f32.partialorder %v715, 0.0
  %vm732 = vcmp.gt.f32.partialorder %v716, 0.0
  %vm733 = vcmp.gt.f32.partialorder %v717, 0.0
  %vm734 = vcmp.gt.f32.partialorder %v718, 0.0
  %vm735 = vcmp.gt.f32.partialorder %v719, 0.0
  %vm736 = vcmp.gt.f32.partialorder %v720, 0.0
  %vm737 = vcmp.gt.f32.partialorder %v721, 0.0
  %vm738 = vcmp.gt.f32.partialorder %v722, 0.0
  %vm739 = vcmp.gt.f32.partialorder %v723, 0.0
  %vm740 = vcmp.gt.f32.partialorder %v724, 0.0
  %vm741 = vcmp.gt.f32.partialorder %v725, 0.0
  %vm742 = vcmp.gt.f32.partialorder %v726, 0.0
  %v743 = vmul.f32 %v711, 0.01
  %v744 = vmul.f32 %v712, 0.01
  %v745 = vmul.f32 %v713, 0.01
  %v746 = vmul.f32 %v714, 0.01
  %v747 = vmul.f32 %v715, 0.01
  %v748 = vmul.f32 %v716, 0.01
  %v749 = vmul.f32 %v717, 0.01
  %v750 = vmul.f32 %v718, 0.01
  %v751 = vmul.f32 %v719, 0.01
  %v752 = vmul.f32 %v720, 0.01
  %v753 = vmul.f32 %v721, 0.01
  %v754 = vmul.f32 %v722, 0.01
  %v755 = vmul.f32 %v723, 0.01
  %v756 = vmul.f32 %v724, 0.01
  %v757 = vmul.f32 %v725, 0.01
  %v758 = vmul.f32 %v726, 0.01
  %v759 = vsel %vm727, %v711, %v743
  %v760 = vsel %vm728, %v712, %v744
  %v761 = vsel %vm729, %v713, %v745
  %v762 = vsel %vm730, %v714, %v746
  %v763 = vsel %vm731, %v715, %v747
  %v764 = vsel %vm732, %v716, %v748
  %v765 = vsel %vm733, %v717, %v749
  %v766 = vsel %vm734, %v718, %v750
  %v767 = vsel %vm735, %v719, %v751
  %v768 = vsel %vm736, %v720, %v752
  %v769 = vsel %vm737, %v721, %v753
  %v770 = vsel %vm738, %v722, %v754
  %v771 = vsel %vm739, %v723, %v755
  %v772 = vsel %vm740, %v724, %v756
  %v773 = vsel %vm741, %v725, %v757
  %v774 = vsel %vm742, %v726, %v758
  %v775 = vrot.slane %v759, 7
  %v776 = vrot.slane %v760, 7
  %v777 = vrot.slane %v761, 7
  %v778 = vrot.slane %v762, 7
  %v779 = vrot.slane %v763, 7
  %v780 = vrot.slane %v764, 7
  %v781 = vrot.slane %v765, 7
  %v782 = vrot.slane %v766, 7
  %v783 = vrot.slane %v767, 7
  %v784 = vrot.slane %v768, 7
  %v785 = vrot.slane %v769, 7
  %v786 = vrot.slane %v770, 7
  %v787 = vrot.slane %v771, 7
  %v788 = vrot.slane %v772, 7
  %v789 = vrot.slane %v773, 7
  %v790 = vrot.slane %v774, 7
  %v791 = vsel %vm293, %v789, %v790
  %v792 = vsel %vm293, %v788, %v789
  %v793 = vsel %vm293, %v787, %v788
  %v794 = vsel %vm293, %v786, %v787
  %v795 = vsel %vm293, %v785, %v786
  %v796 = vsel %vm293, %v784, %v785
  %v797 = vsel %vm293, %v783, %v784
  %v798 = vsel %vm293, %v782, %v783
  %v799 = vsel %vm293, %v781, %v782
  %v800 = vsel %vm293, %v780, %v781
  %v801 = vsel %vm293, %v779, %v780
  %v802 = vsel %vm293, %v778, %v779
  %v803 = vsel %vm293, %v777, %v778
  %v804 = vsel %vm293, %v776, %v777
  %v805 = vsel %vm293, %v775, %v776
  %v806 = vsel %vm293, %v790, %v775
  %v807 = vsel %vm243, 1, 0
  %v808 = vsel %vm244, 1, 0
  %v809 = vsel %vm245, 1, 0
  %v810 = vsel %vm246, 1, 0
  %v811 = vsel %vm247, 1, 0
  %v812 = vsel %vm248, 1, 0
  %v813 = vsel %vm249, 1, 0
  %v814 = vsel %vm250, 1, 0
  %v815 = vsel %vm251, 1, 0
  %v816 = vsel %vm252, 1, 0
  %v817 = vsel %vm253, 1, 0
  %v818 = vsel %vm254, 1, 0
  %v819 = vsel %vm255, 1, 0
  %v820 = vsel %vm256, 1, 0
  %v821 = vsel %vm257, 1, 0
  %v822 = vsel %vm258, 1, 0
  %vm823 = vcmp.eq.s32.totalorder %v807, 1
  %vm824 = vcmp.eq.s32.totalorder %v808, 1
  %vm825 = vcmp.eq.s32.totalorder %v809, 1
  %vm826 = vcmp.eq.s32.totalorder %v810, 1
  %vm827 = vcmp.eq.s32.totalorder %v811, 1
  %vm828 = vcmp.eq.s32.totalorder %v812, 1
  %vm829 = vcmp.eq.s32.totalorder %v813, 1
  %vm830 = vcmp.eq.s32.totalorder %v814, 1
  %vm831 = vcmp.eq.s32.totalorder %v815, 1
  %vm832 = vcmp.eq.s32.totalorder %v816, 1
  %vm833 = vcmp.eq.s32.totalorder %v817, 1
  %vm834 = vcmp.eq.s32.totalorder %v818, 1
  %vm835 = vcmp.eq.s32.totalorder %v819, 1
  %vm836 = vcmp.eq.s32.totalorder %v820, 1
  %vm837 = vcmp.eq.s32.totalorder %v821, 1
  %vm838 = vcmp.eq.s32.totalorder %v822, 1
  %v839 = vsel %vm823, %v806, 0.0
  %v840 = vsel %vm824, %v805, 0.0
  %v841 = vsel %vm825, %v804, 0.0
  %v842 = vsel %vm826, %v803, 0.0
  %v843 = vsel %vm827, %v802, 0.0
  %v844 = vsel %vm828, %v801, 0.0
  %v845 = vsel %vm829, %v800, 0.0
  %v846 = vsel %vm830, %v799, 0.0
  %v847 = vsel %vm831, %v798, 0.0
  %v848 = vsel %vm832, %v797, 0.0
  %v849 = vsel %vm833, %v796, 0.0
  %v850 = vsel %vm834, %v795, 0.0
  %v851 = vsel %vm835, %v794, 0.0
  %v852 = vsel %vm836, %v793, 0.0
  %v853 = vsel %vm837, %v792, 0.0
  %v854 = vsel %vm838, %v791, 0.0
  %v855 = vrot.slane %v759, 1
  %v856 = vrot.slane %v760, 1
  %v857 = vrot.slane %v761, 1
  %v858 = vrot.slane %v762, 1
  %v859 = vrot.slane %v763, 1
  %v860 = vrot.slane %v764, 1
  %v861 = vrot.slane %v765, 1
  %v862 = vrot.slane %v766, 1
  %v863 = vrot.slane %v767, 1
  %v864 = vrot.slane %v768, 1
  %v865 = vrot.slane %v769, 1
  %v866 = vrot.slane %v770, 1
  %v867 = vrot.slane %v771, 1
  %v868 = vrot.slane %v772, 1
  %v869 = vrot.slane %v773, 1
  %v870 = vrot.slane %v774, 1
  %v871 = vsel %vm558, %v869, %v870
  %v872 = vsel %vm558, %v868, %v869
  %v873 = vsel %vm558, %v867, %v868
  %v874 = vsel %vm558, %v866, %v867
  %v875 = vsel %vm558, %v865, %v866
  %v876 = vsel %vm558, %v864, %v865
  %v877 = vsel %vm558, %v863, %v864
  %v878 = vsel %vm558, %v862, %v863
  %v879 = vsel %vm558, %v861, %v862
  %v880 = vsel %vm558, %v860, %v861
  %v881 = vsel %vm558, %v859, %v860
  %v882 = vsel %vm558, %v858, %v859
  %v883 = vsel %vm558, %v857, %v858
  %v884 = vsel %vm558, %v856, %v857
  %v885 = vsel %vm558, %v855, %v856
  %v886 = vsel %vm558, %v870, %v855
  %v887 = vsel %vm227, 1, 0
  %v888 = vsel %vm228, 1, 0
  %v889 = vsel %vm229, 1, 0
  %v890 = vsel %vm230, 1, 0
  %v891 = vsel %vm231, 1, 0
  %v892 = vsel %vm232, 1, 0
  %v893 = vsel %vm233, 1, 0
  %v894 = vsel %vm234, 1, 0
  %v895 = vsel %vm235, 1, 0
  %v896 = vsel %vm236, 1, 0
  %v897 = vsel %vm237, 1, 0
  %v898 = vsel %vm238, 1, 0
  %v899 = vsel %vm239, 1, 0
  %v900 = vsel %vm240, 1, 0
  %v901 = vsel %vm241, 1, 0
  %v902 = vsel %vm242, 1, 0
  %vm903 = vcmp.eq.s32.totalorder %v887, 1
  %vm904 = vcmp.eq.s32.totalorder %v888, 1
  %vm905 = vcmp.eq.s32.totalorder %v889, 1
  %vm906 = vcmp.eq.s32.totalorder %v890, 1
  %vm907 = vcmp.eq.s32.totalorder %v891, 1
  %vm908 = vcmp.eq.s32.totalorder %v892, 1
  %vm909 = vcmp.eq.s32.totalorder %v893, 1
  %vm910 = vcmp.eq.s32.totalorder %v894, 1
  %vm911 = vcmp.eq.s32.totalorder %v895, 1
  %vm912 = vcmp.eq.s32.totalorder %v896, 1
  %vm913 = vcmp.eq.s32.totalorder %v897, 1
  %vm914 = vcmp.eq.s32.totalorder %v898, 1
  %vm915 = vcmp.eq.s32.totalorder %v899, 1
  %vm916 = vcmp.eq.s32.totalorder %v900, 1
  %vm917 = vcmp.eq.s32.totalorder %v901, 1
  %vm918 = vcmp.eq.s32.totalorder %v902, 1
  %v919 = vsel %vm903, %v885, 0.0
  %v920 = vsel %vm904, %v884, 0.0
  %v921 = vsel %vm905, %v883, 0.0
  %v922 = vsel %vm906, %v882, 0.0
  %v923 = vsel %vm907, %v881, 0.0
  %v924 = vsel %vm908, %v880, 0.0
  %v925 = vsel %vm909, %v879, 0.0
  %v926 = vsel %vm910, %v878, 0.0
  %v927 = vsel %vm911, %v877, 0.0
  %v928 = vsel %vm912, %v876, 0.0
  %v929 = vsel %vm913, %v875, 0.0
  %v930 = vsel %vm914, %v874, 0.0
  %v931 = vsel %vm915, %v873, 0.0
  %v932 = vsel %vm916, %v872, 0.0
  %v933 = vsel %vm917, %v871, 0.0
  %v934 = vsel %vm918, %v886, 0.0
  %951 = vrot.lane.b32.xlu0 %v759, 32
  %v952 = vpop.permute.xlu0 %951
  %953 = vrot.lane.b32.xlu0 %v760, 32
  %v954 = vpop.permute.xlu0 %953
  %955 = vrot.lane.b32.xlu0 %v761, 32
  %v956 = vpop.permute.xlu0 %955
  %957 = vrot.lane.b32.xlu0 %v762, 32
  %v958 = vpop.permute.xlu0 %957
  %959 = vrot.lane.b32.xlu0 %v763, 32
  %v960 = vpop.permute.xlu0 %959
  %961 = vrot.lane.b32.xlu0 %v764, 32
  %v962 = vpop.permute.xlu0 %961
  %963 = vrot.lane.b32.xlu0 %v765, 32
  %v964 = vpop.permute.xlu0 %963
  %965 = vrot.lane.b32.xlu0 %v766, 32
  %v966 = vpop.permute.xlu0 %965
  %967 = vrot.lane.b32.xlu0 %v767, 32
  %v968 = vpop.permute.xlu0 %967
  %969 = vrot.lane.b32.xlu0 %v768, 32
  %v970 = vpop.permute.xlu0 %969
  %971 = vrot.lane.b32.xlu0 %v769, 32
  %v972 = vpop.permute.xlu0 %971
  %973 = vrot.lane.b32.xlu0 %v770, 32
  %v974 = vpop.permute.xlu0 %973
  %975 = vrot.lane.b32.xlu0 %v771, 32
  %v976 = vpop.permute.xlu0 %975
  %977 = vrot.lane.b32.xlu0 %v772, 32
  %v978 = vpop.permute.xlu0 %977
  %979 = vrot.lane.b32.xlu0 %v773, 32
  %v980 = vpop.permute.xlu0 %979
  %981 = vrot.lane.b32.xlu0 %v774, 32
  %v982 = vpop.permute.xlu0 %981
  %1015 = vrot.lane.b32.xlu0 %v919, 64
  %v1016 = vpop.permute.xlu0 %1015
  %1017 = vrot.lane.b32.xlu0 %v920, 64
  %v1018 = vpop.permute.xlu0 %1017
  %1019 = vrot.lane.b32.xlu0 %v921, 64
  %v1020 = vpop.permute.xlu0 %1019
  %1021 = vrot.lane.b32.xlu0 %v922, 64
  %v1022 = vpop.permute.xlu0 %1021
  %1023 = vrot.lane.b32.xlu0 %v923, 64
  %v1024 = vpop.permute.xlu0 %1023
  %1025 = vrot.lane.b32.xlu0 %v924, 64
  %v1026 = vpop.permute.xlu0 %1025
  %1027 = vrot.lane.b32.xlu0 %v925, 64
  %v1028 = vpop.permute.xlu0 %1027
  %1029 = vrot.lane.b32.xlu0 %v926, 64
  %v1030 = vpop.permute.xlu0 %1029
  %1031 = vrot.lane.b32.xlu0 %v927, 64
  %v1032 = vpop.permute.xlu0 %1031
  %1033 = vrot.lane.b32.xlu0 %v928, 64
  %v1034 = vpop.permute.xlu0 %1033
  %1035 = vrot.lane.b32.xlu0 %v929, 64
  %v1036 = vpop.permute.xlu0 %1035
  %1037 = vrot.lane.b32.xlu0 %v930, 64
  %v1038 = vpop.permute.xlu0 %1037
  %1039 = vrot.lane.b32.xlu0 %v931, 64
  %v1040 = vpop.permute.xlu0 %1039
  %1041 = vrot.lane.b32.xlu0 %v932, 64
  %v1042 = vpop.permute.xlu0 %1041
  %1043 = vrot.lane.b32.xlu0 %v933, 64
  %v1044 = vpop.permute.xlu0 %1043
  %1045 = vrot.lane.b32.xlu0 %v934, 64
  %v1046 = vpop.permute.xlu0 %1045
  %vm1063 = vcmask 261120
  %v1064 = vsel %vm1063, %v839, %v952
  %v1065 = vsel %vm1063, %v840, %v954
  %v1066 = vsel %vm1063, %v841, %v956
  %v1067 = vsel %vm1063, %v842, %v958
  %v1068 = vsel %vm1063, %v843, %v960
  %v1069 = vsel %vm1063, %v844, %v962
  %v1070 = vsel %vm1063, %v845, %v964
  %v1071 = vsel %vm1063, %v846, %v966
  %v1072 = vsel %vm1063, %v847, %v968
  %v1073 = vsel %vm1063, %v848, %v970
  %v1074 = vsel %vm1063, %v849, %v972
  %v1075 = vsel %vm1063, %v850, %v974
  %v1076 = vsel %vm1063, %v851, %v976
  %v1077 = vsel %vm1063, %v852, %v978
  %v1078 = vsel %vm1063, %v853, %v980
  %v1079 = vsel %vm1063, %v854, %v982
  %vm1080 = vcmask 523264
  %v1081 = vsel %vm1080, %v1064, %v1016
  %v1082 = vsel %vm1080, %v1065, %v1018
  %v1083 = vsel %vm1080, %v1066, %v1020
  %v1084 = vsel %vm1080, %v1067, %v1022
  %v1085 = vsel %vm1080, %v1068, %v1024
  %v1086 = vsel %vm1080, %v1069, %v1026
  %v1087 = vsel %vm1080, %v1070, %v1028
  %v1088 = vsel %vm1080, %v1071, %v1030
  %v1089 = vsel %vm1080, %v1072, %v1032
  %v1090 = vsel %vm1080, %v1073, %v1034
  %v1091 = vsel %vm1080, %v1074, %v1036
  %v1092 = vsel %vm1080, %v1075, %v1038
  %v1093 = vsel %vm1080, %v1076, %v1040
  %v1094 = vsel %vm1080, %v1077, %v1042
  %v1095 = vsel %vm1080, %v1078, %v1044
  %v1096 = vsel %vm1080, %v1079, %v1046
  %v1097 = vpack.c.bf16 %v1082, %v1081
  %v1098 = vpack.c.bf16 %v1084, %v1083
  %v1099 = vpack.c.bf16 %v1086, %v1085
  %v1100 = vpack.c.bf16 %v1088, %v1087
  %v1101 = vpack.c.bf16 %v1090, %v1089
  %v1102 = vpack.c.bf16 %v1092, %v1091
  %v1103 = vpack.c.bf16 %v1094, %v1093
  %v1104 = vpack.c.bf16 %v1096, %v1095
  %v1105 = vld [vmem:[%s2] sm:$0xf]
  %v1106 = vld [vmem:[%s2 + $0x4] sm:$0xf]
  %v1107 = vld [vmem:[%s2 + $0x8] sm:$0xf]
  %v1108 = vld [vmem:[%s2 + $0xc] sm:$0xf]
  %v1109 = vld [vmem:[%s2 + $0x10] sm:$0xf]
  %v1110 = vld [vmem:[%s2 + $0x14] sm:$0xf]
  %v1111 = vld [vmem:[%s2 + $0x18] sm:$0xf]
  %v1112 = vld [vmem:[%s2 + $0x1c] sm:$0xf]
  %v1113 = vld [vmem:[%s2 + $0x20] sm:$0xf]
  %v1114 = vld [vmem:[%s2 + $0x24] sm:$0xf]
  %v1115 = vld [vmem:[%s2 + $0x28] sm:$0xf]
  %v1116 = vld [vmem:[%s2 + $0x2c] sm:$0xf]
  %v1117 = vlaneseq
  %v1118 = vshrl.u32 %v1117, 7
  %v1119 = vsub.s32 1, %v1118
  %v1120 = vrot.slane %v275, %v1119
  %v1133 = vunpack.c.l.b16 %v1105
  %v1134 = vunpack.c.l.b16 %v1106
  %v1135 = vunpack.c.l.b16 %v1107
  %v1136 = vunpack.c.l.b16 %v1108
  %v1137 = vunpack.c.l.b16 %v1109
  %v1138 = vunpack.c.l.b16 %v1110
  %v1139 = vunpack.c.l.b16 %v1111
  %v1140 = vunpack.c.l.b16 %v1112
  %v1141 = vunpack.c.l.b16 %v1113
  %v1142 = vunpack.c.l.b16 %v1114
  %v1143 = vunpack.c.l.b16 %v1115
  %v1144 = vunpack.c.l.b16 %v1116
  %v1145 = vpack.c.b16 %v1134, %v1133
  %v1146 = vpack.c.b16 %v1136, %v1135
  %v1147 = vpack.c.b16 %v1138, %v1137
  %v1148 = vpack.c.b16 %v1140, %v1139
  %v1149 = vpack.c.b16 %v1142, %v1141
  %v1150 = vpack.c.b16 %v1144, %v1143
  %vm1157 = vcmask 785408
  %v1159 = vsel %vm1157, %v1097, 0
  %v1162 = vsel %vm1157, %v1098, 0
  %v1165 = vsel %vm1157, %v1099, 0
  %v1168 = vsel %vm1157, %v1100, 0
  %v1171 = vsel %vm1157, %v1101, 0
  %v1174 = vsel %vm1157, %v1102, 0
  %v1177 = vsel %vm1157, %v1103, 0
  %v1180 = vsel %vm1157, %v1104, 0
  %1182 = vmatprep.subr.bf16.mxu0 0
  %1183 = vmatpush1.bf16.msra.mxu0 0
  %1184 = vmatprep.subr.bf16.mxu0 0
  %1185 = vmatpush1.bf16.msra.mxu0 0
  %1186 = vmatprep.subr.bf16.mxu0 0
  %1187 = vmatpush1.bf16.msra.mxu0 %v1150
  %1188 = vmatprep.subr.bf16.mxu0 0
  %1189 = vmatpush1.bf16.msra.mxu0 %v1149
  %1190 = vmatprep.subr.bf16.mxu0 0
  %1191 = vmatpush1.bf16.msra.mxu0 %v1148
  %1192 = vmatprep.subr.bf16.mxu0 0
  %1193 = vmatpush1.bf16.msra.mxu0 %v1147
  %1194 = vmatprep.subr.bf16.mxu0 0
  %1195 = vmatpush1.bf16.msra.mxu0 %v1146
  %1196 = vmatprep.subr.bf16.mxu0 0
  %1197 = vmatpush1.bf16.msra.mxu0 %v1145
  %1198 = vmatprep.subr.bf16.mxu0 0
  %1199 = vmatpush2.bf16.msra.mxu0 0
  %1200 = vmatprep.subr.bf16.mxu0 0
  %1201 = vmatpush2.bf16.msra.mxu0 0
  %1202 = vmatprep.subr.bf16.mxu0 0
  %1203 = vmatpush2.bf16.msra.mxu0 0
  %1204 = vmatprep.subr.bf16.mxu0 0
  %1205 = vmatpush2.bf16.msra.mxu0 0
  %1206 = vmatprep.subr.bf16.mxu0 0
  %1207 = vmatpush2.bf16.msra.mxu0 0
  %1208 = vmatprep.subr.bf16.mxu0 0
  %1209 = vmatpush2.bf16.msra.mxu0 0
  %1210 = vmatprep.subr.bf16.mxu0 0
  %1211 = vmatpush2.bf16.msra.mxu0 0
  %1212 = vmatprep.subr.bf16.mxu0 0
  %1213 = vmatpush2.bf16.msra.mxu0 0
  %1214 = vmatprep.mubr.bf16.mxu0 0
  %1215 = vmatmul.mubr.bf16.gmra.mxu0 %v1159
  %v1216 = vpop.f32.mrf.mxu0
  %v1217 = vadd.f32 %v1120, %v1216
  %v1218 = vpop.f32.mrf.mxu0
  %v1219 = vpop.f32.mrf.mxu0
  %v1220 = vadd.f32 %v1120, %v1219
  %v1221 = vpop.f32.mrf.mxu0
  %1222 = vmatprep.mubr.bf16.mxu0 0
  %1223 = vmatmul.mubr.bf16.gmra.mxu0 %v1162
  %v1224 = vpop.f32.mrf.mxu0
  %v1225 = vadd.f32 %v1120, %v1224
  %v1226 = vpop.f32.mrf.mxu0
  %v1227 = vpop.f32.mrf.mxu0
  %v1228 = vadd.f32 %v1120, %v1227
  %v1229 = vpop.f32.mrf.mxu0
  %1230 = vmatprep.mubr.bf16.mxu0 0
  %1231 = vmatmul.mubr.bf16.gmra.mxu0 %v1165
  %v1232 = vpop.f32.mrf.mxu0
  %v1233 = vadd.f32 %v1120, %v1232
  %v1234 = vpop.f32.mrf.mxu0
  %v1235 = vpop.f32.mrf.mxu0
  %v1236 = vadd.f32 %v1120, %v1235
  %v1237 = vpop.f32.mrf.mxu0
  %1238 = vmatprep.mubr.bf16.mxu0 0
  %1239 = vmatmul.mubr.bf16.gmra.mxu0 %v1168
  %v1240 = vpop.f32.mrf.mxu0
  %v1241 = vadd.f32 %v1120, %v1240
  %v1242 = vpop.f32.mrf.mxu0
  %v1243 = vpop.f32.mrf.mxu0
  %v1244 = vadd.f32 %v1120, %v1243
  %v1245 = vpop.f32.mrf.mxu0
  %1246 = vmatprep.mubr.bf16.mxu0 0
  %1247 = vmatmul.mubr.bf16.gmra.mxu0 %v1171
  %v1248 = vpop.f32.mrf.mxu0
  %v1249 = vadd.f32 %v1120, %v1248
  %v1250 = vpop.f32.mrf.mxu0
  %v1251 = vpop.f32.mrf.mxu0
  %v1252 = vadd.f32 %v1120, %v1251
  %v1253 = vpop.f32.mrf.mxu0
  %1254 = vmatprep.mubr.bf16.mxu0 0
  %1255 = vmatmul.mubr.bf16.gmra.mxu0 %v1174
  %v1256 = vpop.f32.mrf.mxu0
  %v1257 = vadd.f32 %v1120, %v1256
  %v1258 = vpop.f32.mrf.mxu0
  %v1259 = vpop.f32.mrf.mxu0
  %v1260 = vadd.f32 %v1120, %v1259
  %v1261 = vpop.f32.mrf.mxu0
  %1262 = vmatprep.mubr.bf16.mxu0 0
  %1263 = vmatmul.mubr.bf16.gmra.mxu0 %v1177
  %v1264 = vpop.f32.mrf.mxu0
  %v1265 = vadd.f32 %v1120, %v1264
  %v1266 = vpop.f32.mrf.mxu0
  %v1267 = vpop.f32.mrf.mxu0
  %v1268 = vadd.f32 %v1120, %v1267
  %v1269 = vpop.f32.mrf.mxu0
  %1270 = vmatprep.mubr.bf16.mxu0 0
  %1271 = vmatmul.mubr.bf16.gmra.mxu0 %v1180
  %v1272 = vpop.f32.mrf.mxu0
  %v1273 = vadd.f32 %v1120, %v1272
  %v1274 = vpop.f32.mrf.mxu0
  %v1275 = vpop.f32.mrf.mxu0
  %v1276 = vadd.f32 %v1120, %v1275
  %v1277 = vpop.f32.mrf.mxu0
  %1278 = vdwg.mxu0
  %vm1279 = vcmp.gt.f32.partialorder %v1217, 0.0
  %vm1280 = vcmp.gt.f32.partialorder %v1220, 0.0
  %vm1281 = vcmp.gt.f32.partialorder %v1225, 0.0
  %vm1282 = vcmp.gt.f32.partialorder %v1228, 0.0
  %vm1283 = vcmp.gt.f32.partialorder %v1233, 0.0
  %vm1284 = vcmp.gt.f32.partialorder %v1236, 0.0
  %vm1285 = vcmp.gt.f32.partialorder %v1241, 0.0
  %vm1286 = vcmp.gt.f32.partialorder %v1244, 0.0
  %vm1287 = vcmp.gt.f32.partialorder %v1249, 0.0
  %vm1288 = vcmp.gt.f32.partialorder %v1252, 0.0
  %vm1289 = vcmp.gt.f32.partialorder %v1257, 0.0
  %vm1290 = vcmp.gt.f32.partialorder %v1260, 0.0
  %vm1291 = vcmp.gt.f32.partialorder %v1265, 0.0
  %vm1292 = vcmp.gt.f32.partialorder %v1268, 0.0
  %vm1293 = vcmp.gt.f32.partialorder %v1273, 0.0
  %vm1294 = vcmp.gt.f32.partialorder %v1276, 0.0
  %v1295 = vmul.f32 %v1217, 0.01
  %v1296 = vmul.f32 %v1220, 0.01
  %v1297 = vmul.f32 %v1225, 0.01
  %v1298 = vmul.f32 %v1228, 0.01
  %v1299 = vmul.f32 %v1233, 0.01
  %v1300 = vmul.f32 %v1236, 0.01
  %v1301 = vmul.f32 %v1241, 0.01
  %v1302 = vmul.f32 %v1244, 0.01
  %v1303 = vmul.f32 %v1249, 0.01
  %v1304 = vmul.f32 %v1252, 0.01
  %v1305 = vmul.f32 %v1257, 0.01
  %v1306 = vmul.f32 %v1260, 0.01
  %v1307 = vmul.f32 %v1265, 0.01
  %v1308 = vmul.f32 %v1268, 0.01
  %v1309 = vmul.f32 %v1273, 0.01
  %v1310 = vmul.f32 %v1276, 0.01
  %v1311 = vsel %vm1279, %v1217, %v1295
  %v1312 = vsel %vm1280, %v1220, %v1296
  %v1313 = vsel %vm1281, %v1225, %v1297
  %v1314 = vsel %vm1282, %v1228, %v1298
  %v1315 = vsel %vm1283, %v1233, %v1299
  %v1316 = vsel %vm1284, %v1236, %v1300
  %v1317 = vsel %vm1285, %v1241, %v1301
  %v1318 = vsel %vm1286, %v1244, %v1302
  %v1319 = vsel %vm1287, %v1249, %v1303
  %v1320 = vsel %vm1288, %v1252, %v1304
  %v1321 = vsel %vm1289, %v1257, %v1305
  %v1322 = vsel %vm1290, %v1260, %v1306
  %v1323 = vsel %vm1291, %v1265, %v1307
  %v1324 = vsel %vm1292, %v1268, %v1308
  %v1325 = vsel %vm1293, %v1273, %v1309
  %v1326 = vsel %vm1294, %v1276, %v1310
  %v1327 = vrot.slane %v1311, 7
  %v1328 = vrot.slane %v1312, 7
  %v1329 = vrot.slane %v1313, 7
  %v1330 = vrot.slane %v1314, 7
  %v1331 = vrot.slane %v1315, 7
  %v1332 = vrot.slane %v1316, 7
  %v1333 = vrot.slane %v1317, 7
  %v1334 = vrot.slane %v1318, 7
  %v1335 = vrot.slane %v1319, 7
  %v1336 = vrot.slane %v1320, 7
  %v1337 = vrot.slane %v1321, 7
  %v1338 = vrot.slane %v1322, 7
  %v1339 = vrot.slane %v1323, 7
  %v1340 = vrot.slane %v1324, 7
  %v1341 = vrot.slane %v1325, 7
  %v1342 = vrot.slane %v1326, 7
  %v1343 = vsel %vm293, %v1341, %v1342
  %v1344 = vsel %vm293, %v1340, %v1341
  %v1345 = vsel %vm293, %v1339, %v1340
  %v1346 = vsel %vm293, %v1338, %v1339
  %v1347 = vsel %vm293, %v1337, %v1338
  %v1348 = vsel %vm293, %v1336, %v1337
  %v1349 = vsel %vm293, %v1335, %v1336
  %v1350 = vsel %vm293, %v1334, %v1335
  %v1351 = vsel %vm293, %v1333, %v1334
  %v1352 = vsel %vm293, %v1332, %v1333
  %v1353 = vsel %vm293, %v1331, %v1332
  %v1354 = vsel %vm293, %v1330, %v1331
  %v1355 = vsel %vm293, %v1329, %v1330
  %v1356 = vsel %vm293, %v1328, %v1329
  %v1357 = vsel %vm293, %v1327, %v1328
  %v1358 = vsel %vm293, %v1342, %v1327
  %v1359 = vsel %vm823, %v1358, 0.0
  %v1360 = vsel %vm824, %v1357, 0.0
  %v1361 = vsel %vm825, %v1356, 0.0
  %v1362 = vsel %vm826, %v1355, 0.0
  %v1363 = vsel %vm827, %v1354, 0.0
  %v1364 = vsel %vm828, %v1353, 0.0
  %v1365 = vsel %vm829, %v1352, 0.0
  %v1366 = vsel %vm830, %v1351, 0.0
  %v1367 = vsel %vm831, %v1350, 0.0
  %v1368 = vsel %vm832, %v1349, 0.0
  %v1369 = vsel %vm833, %v1348, 0.0
  %v1370 = vsel %vm834, %v1347, 0.0
  %v1371 = vsel %vm835, %v1346, 0.0
  %v1372 = vsel %vm836, %v1345, 0.0
  %v1373 = vsel %vm837, %v1344, 0.0
  %v1374 = vsel %vm838, %v1343, 0.0
  %v1375 = vrot.slane %v1311, 1
  %v1376 = vrot.slane %v1312, 1
  %v1377 = vrot.slane %v1313, 1
  %v1378 = vrot.slane %v1314, 1
  %v1379 = vrot.slane %v1315, 1
  %v1380 = vrot.slane %v1316, 1
  %v1381 = vrot.slane %v1317, 1
  %v1382 = vrot.slane %v1318, 1
  %v1383 = vrot.slane %v1319, 1
  %v1384 = vrot.slane %v1320, 1
  %v1385 = vrot.slane %v1321, 1
  %v1386 = vrot.slane %v1322, 1
  %v1387 = vrot.slane %v1323, 1
  %v1388 = vrot.slane %v1324, 1
  %v1389 = vrot.slane %v1325, 1
  %v1390 = vrot.slane %v1326, 1
  %v1391 = vsel %vm558, %v1389, %v1390
  %v1392 = vsel %vm558, %v1388, %v1389
  %v1393 = vsel %vm558, %v1387, %v1388
  %v1394 = vsel %vm558, %v1386, %v1387
  %v1395 = vsel %vm558, %v1385, %v1386
  %v1396 = vsel %vm558, %v1384, %v1385
  %v1397 = vsel %vm558, %v1383, %v1384
  %v1398 = vsel %vm558, %v1382, %v1383
  %v1399 = vsel %vm558, %v1381, %v1382
  %v1400 = vsel %vm558, %v1380, %v1381
  %v1401 = vsel %vm558, %v1379, %v1380
  %v1402 = vsel %vm558, %v1378, %v1379
  %v1403 = vsel %vm558, %v1377, %v1378
  %v1404 = vsel %vm558, %v1376, %v1377
  %v1405 = vsel %vm558, %v1375, %v1376
  %v1406 = vsel %vm558, %v1390, %v1375
  %v1407 = vsel %vm903, %v1405, 0.0
  %v1408 = vsel %vm904, %v1404, 0.0
  %v1409 = vsel %vm905, %v1403, 0.0
  %v1410 = vsel %vm906, %v1402, 0.0
  %v1411 = vsel %vm907, %v1401, 0.0
  %v1412 = vsel %vm908, %v1400, 0.0
  %v1413 = vsel %vm909, %v1399, 0.0
  %v1414 = vsel %vm910, %v1398, 0.0
  %v1415 = vsel %vm911, %v1397, 0.0
  %v1416 = vsel %vm912, %v1396, 0.0
  %v1417 = vsel %vm913, %v1395, 0.0
  %v1418 = vsel %vm914, %v1394, 0.0
  %v1419 = vsel %vm915, %v1393, 0.0
  %v1420 = vsel %vm916, %v1392, 0.0
  %v1421 = vsel %vm917, %v1391, 0.0
  %v1422 = vsel %vm918, %v1406, 0.0
  %1439 = vrot.lane.b32.xlu0 %v1311, 64
  %v1440 = vpop.permute.xlu0 %1439
  %1441 = vrot.lane.b32.xlu0 %v1312, 64
  %v1442 = vpop.permute.xlu0 %1441
  %1443 = vrot.lane.b32.xlu0 %v1313, 64
  %v1444 = vpop.permute.xlu0 %1443
  %1445 = vrot.lane.b32.xlu0 %v1314, 64
  %v1446 = vpop.permute.xlu0 %1445
  %1447 = vrot.lane.b32.xlu0 %v1315, 64
  %v1448 = vpop.permute.xlu0 %1447
  %1449 = vrot.lane.b32.xlu0 %v1316, 64
  %v1450 = vpop.permute.xlu0 %1449
  %1451 = vrot.lane.b32.xlu0 %v1317, 64
  %v1452 = vpop.permute.xlu0 %1451
  %1453 = vrot.lane.b32.xlu0 %v1318, 64
  %v1454 = vpop.permute.xlu0 %1453
  %1455 = vrot.lane.b32.xlu0 %v1319, 64
  %v1456 = vpop.permute.xlu0 %1455
  %1457 = vrot.lane.b32.xlu0 %v1320, 64
  %v1458 = vpop.permute.xlu0 %1457
  %1459 = vrot.lane.b32.xlu0 %v1321, 64
  %v1460 = vpop.permute.xlu0 %1459
  %1461 = vrot.lane.b32.xlu0 %v1322, 64
  %v1462 = vpop.permute.xlu0 %1461
  %1463 = vrot.lane.b32.xlu0 %v1323, 64
  %v1464 = vpop.permute.xlu0 %1463
  %1465 = vrot.lane.b32.xlu0 %v1324, 64
  %v1466 = vpop.permute.xlu0 %1465
  %1467 = vrot.lane.b32.xlu0 %v1325, 64
  %v1468 = vpop.permute.xlu0 %1467
  %1469 = vrot.lane.b32.xlu0 %v1326, 64
  %v1470 = vpop.permute.xlu0 %1469
  %v1487 = vsel %vm1080, %v1359, %v1440
  %v1488 = vsel %vm1080, %v1360, %v1442
  %v1489 = vsel %vm1080, %v1361, %v1444
  %v1490 = vsel %vm1080, %v1362, %v1446
  %v1491 = vsel %vm1080, %v1363, %v1448
  %v1492 = vsel %vm1080, %v1364, %v1450
  %v1493 = vsel %vm1080, %v1365, %v1452
  %v1494 = vsel %vm1080, %v1366, %v1454
  %v1495 = vsel %vm1080, %v1367, %v1456
  %v1496 = vsel %vm1080, %v1368, %v1458
  %v1497 = vsel %vm1080, %v1369, %v1460
  %v1498 = vsel %vm1080, %v1370, %v1462
  %v1499 = vsel %vm1080, %v1371, %v1464
  %v1500 = vsel %vm1080, %v1372, %v1466
  %v1501 = vsel %vm1080, %v1373, %v1468
  %v1502 = vsel %vm1080, %v1374, %v1470
  %v1503 = vpack.c.bf16 %v1488, %v1487
  %v1504 = vpack.c.bf16 %v1408, %v1407
  %v1505 = vpack.c.bf16 %v1490, %v1489
  %v1506 = vpack.c.bf16 %v1410, %v1409
  %v1507 = vpack.c.bf16 %v1492, %v1491
  %v1508 = vpack.c.bf16 %v1412, %v1411
  %v1509 = vpack.c.bf16 %v1494, %v1493
  %v1510 = vpack.c.bf16 %v1414, %v1413
  %v1511 = vpack.c.bf16 %v1496, %v1495
  %v1512 = vpack.c.bf16 %v1416, %v1415
  %v1513 = vpack.c.bf16 %v1498, %v1497
  %v1514 = vpack.c.bf16 %v1418, %v1417
  %v1515 = vpack.c.bf16 %v1500, %v1499
  %v1516 = vpack.c.bf16 %v1420, %v1419
  %v1517 = vpack.c.bf16 %v1502, %v1501
  %v1518 = vpack.c.bf16 %v1422, %v1421
  %v1519 = vld [vmem:[%s2 + $0x30] sm:$0xf]
  %v1520 = vld [vmem:[%s2 + $0x34] sm:$0xf]
  %v1521 = vld [vmem:[%s2 + $0x38] sm:$0xf]
  %v1522 = vld [vmem:[%s2 + $0x3c] sm:$0xf]
  %v1523 = vld [vmem:[%s2 + $0x40] sm:$0xf]
  %v1524 = vld [vmem:[%s2 + $0x44] sm:$0xf]
  %v1525 = vld [vmem:[%s2 + $0x48] sm:$0xf]
  %v1526 = vld [vmem:[%s2 + $0x4c] sm:$0xf]
  %v1527 = vld [vmem:[%s2 + $0x50] sm:$0xf]
  %v1528 = vld [vmem:[%s2 + $0x54] sm:$0xf]
  %v1529 = vld [vmem:[%s2 + $0x58] sm:$0xf]
  %v1530 = vld [vmem:[%s2 + $0x5c] sm:$0xf]
  %v1531 = vld [vmem:[%s2 + $0x60] sm:$0xf]
  %v1532 = vld [vmem:[%s2 + $0x64] sm:$0xf]
  %v1533 = vld [vmem:[%s2 + $0x68] sm:$0xf]
  %v1534 = vld [vmem:[%s2 + $0x6c] sm:$0xf]
  %v1535 = vld [vmem:[%s2 + $0x70] sm:$0xf]
  %v1536 = vld [vmem:[%s2 + $0x74] sm:$0xf]
  %v1537 = vld [vmem:[%s2 + $0x78] sm:$0xf]
  %v1538 = vld [vmem:[%s2 + $0x7c] sm:$0xf]
  %v1539 = vld [vmem:[%s2 + $0x80] sm:$0xf]
  %v1540 = vld [vmem:[%s2 + $0x84] sm:$0xf]
  %v1541 = vld [vmem:[%s2 + $0x88] sm:$0xf]
  %v1542 = vld [vmem:[%s2 + $0x8c] sm:$0xf]
  %v1543 = vlaneseq
  %v1544 = vshrl.u32 %v1543, 7
  %v1545 = vsub.s32 2, %v1544
  %v1546 = vrot.slane %v275, %v1545
  %v1571 = vunpack.c.l.b16 %v1519
  %v1572 = vunpack.c.l.b16 %v1520
  %v1573 = vunpack.c.l.b16 %v1521
  %v1574 = vunpack.c.l.b16 %v1522
  %v1575 = vunpack.c.l.b16 %v1523
  %v1576 = vunpack.c.l.b16 %v1524
  %v1577 = vunpack.c.l.b16 %v1525
  %v1578 = vunpack.c.l.b16 %v1526
  %v1579 = vunpack.c.l.b16 %v1527
  %v1580 = vunpack.c.l.b16 %v1528
  %v1581 = vunpack.c.l.b16 %v1529
  %v1582 = vunpack.c.l.b16 %v1530
  %v1583 = vunpack.c.l.b16 %v1531
  %v1584 = vunpack.c.l.b16 %v1532
  %v1585 = vunpack.c.l.b16 %v1533
  %v1586 = vunpack.c.l.b16 %v1534
  %v1587 = vunpack.c.l.b16 %v1535
  %v1588 = vunpack.c.l.b16 %v1536
  %v1589 = vunpack.c.l.b16 %v1537
  %v1590 = vunpack.c.l.b16 %v1538
  %v1591 = vunpack.c.l.b16 %v1539
  %v1592 = vunpack.c.l.b16 %v1540
  %v1593 = vunpack.c.l.b16 %v1541
  %v1594 = vunpack.c.l.b16 %v1542
  %v1595 = vpack.c.b16 %v1572, %v1571
  %v1596 = vpack.c.b16 %v1574, %v1573
  %v1597 = vpack.c.b16 %v1576, %v1575
  %v1598 = vpack.c.b16 %v1578, %v1577
  %v1599 = vpack.c.b16 %v1580, %v1579
  %v1600 = vpack.c.b16 %v1582, %v1581
  %v1601 = vpack.c.b16 %v1584, %v1583
  %v1602 = vpack.c.b16 %v1586, %v1585
  %v1603 = vpack.c.b16 %v1588, %v1587
  %v1604 = vpack.c.b16 %v1590, %v1589
  %v1605 = vpack.c.b16 %v1592, %v1591
  %v1606 = vpack.c.b16 %v1594, %v1593
  %v1620 = vsel %vm1080, %v1504, 0
  %v1623 = vsel %vm1080, %v1506, 0
  %v1626 = vsel %vm1080, %v1508, 0
  %v1629 = vsel %vm1080, %v1510, 0
  %v1632 = vsel %vm1080, %v1512, 0
  %v1635 = vsel %vm1080, %v1514, 0
  %v1638 = vsel %vm1080, %v1516, 0
  %v1641 = vsel %vm1080, %v1518, 0
  %1643 = vmatprep.subr.bf16.mxu0 0
  %1644 = vmatpush1.bf16.msra.mxu0 %v1602
  %1645 = vmatprep.subr.bf16.mxu0 0
  %1646 = vmatpush1.bf16.msra.mxu0 %v1601
  %1647 = vmatprep.subr.bf16.mxu0 0
  %1648 = vmatpush1.bf16.msra.mxu0 %v1600
  %1649 = vmatprep.subr.bf16.mxu0 0
  %1650 = vmatpush1.bf16.msra.mxu0 %v1599
  %1651 = vmatprep.subr.bf16.mxu0 0
  %1652 = vmatpush1.bf16.msra.mxu0 %v1598
  %1653 = vmatprep.subr.bf16.mxu0 0
  %1654 = vmatpush1.bf16.msra.mxu0 %v1597
  %1655 = vmatprep.subr.bf16.mxu0 0
  %1656 = vmatpush1.bf16.msra.mxu0 %v1596
  %1657 = vmatprep.subr.bf16.mxu0 0
  %1658 = vmatpush1.bf16.msra.mxu0 %v1595
  %1659 = vmatprep.subr.bf16.mxu0 0
  %1660 = vmatpush2.bf16.msra.mxu0 0
  %1661 = vmatprep.subr.bf16.mxu0 0
  %1662 = vmatpush2.bf16.msra.mxu0 0
  %1663 = vmatprep.subr.bf16.mxu0 0
  %1664 = vmatpush2.bf16.msra.mxu0 0
  %1665 = vmatprep.subr.bf16.mxu0 0
  %1666 = vmatpush2.bf16.msra.mxu0 0
  %1667 = vmatprep.subr.bf16.mxu0 0
  %1668 = vmatpush2.bf16.msra.mxu0 %v1606
  %1669 = vmatprep.subr.bf16.mxu0 0
  %1670 = vmatpush2.bf16.msra.mxu0 %v1605
  %1671 = vmatprep.subr.bf16.mxu0 0
  %1672 = vmatpush2.bf16.msra.mxu0 %v1604
  %1673 = vmatprep.subr.bf16.mxu0 0
  %1674 = vmatpush2.bf16.msra.mxu0 %v1603
  %1675 = vmatprep.mubr.bf16.mxu0 %v1620
  %1676 = vmatmul.mubr.bf16.gmra.mxu0 %v1503
  %v1677 = vpop.f32.mrf.mxu0
  %v1678 = vadd.f32 %v1546, %v1677
  %v1679 = vpop.f32.mrf.mxu0
  %v1680 = vpop.f32.mrf.mxu0
  %v1681 = vadd.f32 %v1546, %v1680
  %v1682 = vpop.f32.mrf.mxu0
  %1683 = vmatprep.mubr.bf16.mxu0 %v1623
  %1684 = vmatmul.mubr.bf16.gmra.mxu0 %v1505
  %v1685 = vpop.f32.mrf.mxu0
  %v1686 = vadd.f32 %v1546, %v1685
  %v1687 = vpop.f32.mrf.mxu0
  %v1688 = vpop.f32.mrf.mxu0
  %v1689 = vadd.f32 %v1546, %v1688
  %v1690 = vpop.f32.mrf.mxu0
  %1691 = vmatprep.mubr.bf16.mxu0 %v1626
  %1692 = vmatmul.mubr.bf16.gmra.mxu0 %v1507
  %v1693 = vpop.f32.mrf.mxu0
  %v1694 = vadd.f32 %v1546, %v1693
  %v1695 = vpop.f32.mrf.mxu0
  %v1696 = vpop.f32.mrf.mxu0
  %v1697 = vadd.f32 %v1546, %v1696
  %v1698 = vpop.f32.mrf.mxu0
  %1699 = vmatprep.mubr.bf16.mxu0 %v1629
  %1700 = vmatmul.mubr.bf16.gmra.mxu0 %v1509
  %v1701 = vpop.f32.mrf.mxu0
  %v1702 = vadd.f32 %v1546, %v1701
  %v1703 = vpop.f32.mrf.mxu0
  %v1704 = vpop.f32.mrf.mxu0
  %v1705 = vadd.f32 %v1546, %v1704
  %v1706 = vpop.f32.mrf.mxu0
  %1707 = vmatprep.mubr.bf16.mxu0 %v1632
  %1708 = vmatmul.mubr.bf16.gmra.mxu0 %v1511
  %v1709 = vpop.f32.mrf.mxu0
  %v1710 = vadd.f32 %v1546, %v1709
  %v1711 = vpop.f32.mrf.mxu0
  %v1712 = vpop.f32.mrf.mxu0
  %v1713 = vadd.f32 %v1546, %v1712
  %v1714 = vpop.f32.mrf.mxu0
  %1715 = vmatprep.mubr.bf16.mxu0 %v1635
  %1716 = vmatmul.mubr.bf16.gmra.mxu0 %v1513
  %v1717 = vpop.f32.mrf.mxu0
  %v1718 = vadd.f32 %v1546, %v1717
  %v1719 = vpop.f32.mrf.mxu0
  %v1720 = vpop.f32.mrf.mxu0
  %v1721 = vadd.f32 %v1546, %v1720
  %v1722 = vpop.f32.mrf.mxu0
  %1723 = vmatprep.mubr.bf16.mxu0 %v1638
  %1724 = vmatmul.mubr.bf16.gmra.mxu0 %v1515
  %v1725 = vpop.f32.mrf.mxu0
  %v1726 = vadd.f32 %v1546, %v1725
  %v1727 = vpop.f32.mrf.mxu0
  %v1728 = vpop.f32.mrf.mxu0
  %v1729 = vadd.f32 %v1546, %v1728
  %v1730 = vpop.f32.mrf.mxu0
  %1731 = vmatprep.mubr.bf16.mxu0 %v1641
  %1732 = vmatmul.mubr.bf16.gmra.mxu0 %v1517
  %v1733 = vpop.f32.mrf.mxu0
  %v1734 = vadd.f32 %v1546, %v1733
  %v1735 = vpop.f32.mrf.mxu0
  %v1736 = vpop.f32.mrf.mxu0
  %v1737 = vadd.f32 %v1546, %v1736
  %v1738 = vpop.f32.mrf.mxu0
  %1739 = vdwg.mxu0
  %vm1740 = vcmp.gt.f32.partialorder %v1678, 0.0
  %vm1741 = vcmp.gt.f32.partialorder %v1681, 0.0
  %vm1742 = vcmp.gt.f32.partialorder %v1686, 0.0
  %vm1743 = vcmp.gt.f32.partialorder %v1689, 0.0
  %vm1744 = vcmp.gt.f32.partialorder %v1694, 0.0
  %vm1745 = vcmp.gt.f32.partialorder %v1697, 0.0
  %vm1746 = vcmp.gt.f32.partialorder %v1702, 0.0
  %vm1747 = vcmp.gt.f32.partialorder %v1705, 0.0
  %vm1748 = vcmp.gt.f32.partialorder %v1710, 0.0
  %vm1749 = vcmp.gt.f32.partialorder %v1713, 0.0
  %vm1750 = vcmp.gt.f32.partialorder %v1718, 0.0
  %vm1751 = vcmp.gt.f32.partialorder %v1721, 0.0
  %vm1752 = vcmp.gt.f32.partialorder %v1726, 0.0
  %vm1753 = vcmp.gt.f32.partialorder %v1729, 0.0
  %vm1754 = vcmp.gt.f32.partialorder %v1734, 0.0
  %vm1755 = vcmp.gt.f32.partialorder %v1737, 0.0
  %v1756 = vmul.f32 %v1678, 0.01
  %v1757 = vmul.f32 %v1681, 0.01
  %v1758 = vmul.f32 %v1686, 0.01
  %v1759 = vmul.f32 %v1689, 0.01
  %v1760 = vmul.f32 %v1694, 0.01
  %v1761 = vmul.f32 %v1697, 0.01
  %v1762 = vmul.f32 %v1702, 0.01
  %v1763 = vmul.f32 %v1705, 0.01
  %v1764 = vmul.f32 %v1710, 0.01
  %v1765 = vmul.f32 %v1713, 0.01
  %v1766 = vmul.f32 %v1718, 0.01
  %v1767 = vmul.f32 %v1721, 0.01
  %v1768 = vmul.f32 %v1726, 0.01
  %v1769 = vmul.f32 %v1729, 0.01
  %v1770 = vmul.f32 %v1734, 0.01
  %v1771 = vmul.f32 %v1737, 0.01
  %v1772 = vsel %vm1740, %v1678, %v1756
  %v1773 = vsel %vm1741, %v1681, %v1757
  %v1774 = vsel %vm1742, %v1686, %v1758
  %v1775 = vsel %vm1743, %v1689, %v1759
  %v1776 = vsel %vm1744, %v1694, %v1760
  %v1777 = vsel %vm1745, %v1697, %v1761
  %v1778 = vsel %vm1746, %v1702, %v1762
  %v1779 = vsel %vm1747, %v1705, %v1763
  %v1780 = vsel %vm1748, %v1710, %v1764
  %v1781 = vsel %vm1749, %v1713, %v1765
  %v1782 = vsel %vm1750, %v1718, %v1766
  %v1783 = vsel %vm1751, %v1721, %v1767
  %v1784 = vsel %vm1752, %v1726, %v1768
  %v1785 = vsel %vm1753, %v1729, %v1769
  %v1786 = vsel %vm1754, %v1734, %v1770
  %v1787 = vsel %vm1755, %v1737, %v1771
  %v1788 = vrot.slane %v1772, 7
  %v1789 = vrot.slane %v1773, 7
  %v1790 = vrot.slane %v1774, 7
  %v1791 = vrot.slane %v1775, 7
  %v1792 = vrot.slane %v1776, 7
  %v1793 = vrot.slane %v1777, 7
  %v1794 = vrot.slane %v1778, 7
  %v1795 = vrot.slane %v1779, 7
  %v1796 = vrot.slane %v1780, 7
  %v1797 = vrot.slane %v1781, 7
  %v1798 = vrot.slane %v1782, 7
  %v1799 = vrot.slane %v1783, 7
  %v1800 = vrot.slane %v1784, 7
  %v1801 = vrot.slane %v1785, 7
  %v1802 = vrot.slane %v1786, 7
  %v1803 = vrot.slane %v1787, 7
  %v1804 = vsel %vm293, %v1802, %v1803
  %v1805 = vsel %vm293, %v1801, %v1802
  %v1806 = vsel %vm293, %v1800, %v1801
  %v1807 = vsel %vm293, %v1799, %v1800
  %v1808 = vsel %vm293, %v1798, %v1799
  %v1809 = vsel %vm293, %v1797, %v1798
  %v1810 = vsel %vm293, %v1796, %v1797
  %v1811 = vsel %vm293, %v1795, %v1796
  %v1812 = vsel %vm293, %v1794, %v1795
  %v1813 = vsel %vm293, %v1793, %v1794
  %v1814 = vsel %vm293, %v1792, %v1793
  %v1815 = vsel %vm293, %v1791, %v1792
  %v1816 = vsel %vm293, %v1790, %v1791
  %v1817 = vsel %vm293, %v1789, %v1790
  %v1818 = vsel %vm293, %v1788, %v1789
  %v1819 = vsel %vm293, %v1803, %v1788
  %v1820 = vsel %vm823, %v1819, 0.0
  %v1821 = vsel %vm824, %v1818, 0.0
  %v1822 = vsel %vm825, %v1817, 0.0
  %v1823 = vsel %vm826, %v1816, 0.0
  %v1824 = vsel %vm827, %v1815, 0.0
  %v1825 = vsel %vm828, %v1814, 0.0
  %v1826 = vsel %vm829, %v1813, 0.0
  %v1827 = vsel %vm830, %v1812, 0.0
  %v1828 = vsel %vm831, %v1811, 0.0
  %v1829 = vsel %vm832, %v1810, 0.0
  %v1830 = vsel %vm833, %v1809, 0.0
  %v1831 = vsel %vm834, %v1808, 0.0
  %v1832 = vsel %vm835, %v1807, 0.0
  %v1833 = vsel %vm836, %v1806, 0.0
  %v1834 = vsel %vm837, %v1805, 0.0
  %v1835 = vsel %vm838, %v1804, 0.0
  %v1836 = vrot.slane %v1772, 1
  %v1837 = vrot.slane %v1773, 1
  %v1838 = vrot.slane %v1774, 1
  %v1839 = vrot.slane %v1775, 1
  %v1840 = vrot.slane %v1776, 1
  %v1841 = vrot.slane %v1777, 1
  %v1842 = vrot.slane %v1778, 1
  %v1843 = vrot.slane %v1779, 1
  %v1844 = vrot.slane %v1780, 1
  %v1845 = vrot.slane %v1781, 1
  %v1846 = vrot.slane %v1782, 1
  %v1847 = vrot.slane %v1783, 1
  %v1848 = vrot.slane %v1784, 1
  %v1849 = vrot.slane %v1785, 1
  %v1850 = vrot.slane %v1786, 1
  %v1851 = vrot.slane %v1787, 1
  %v1852 = vsel %vm558, %v1850, %v1851
  %v1853 = vsel %vm558, %v1849, %v1850
  %v1854 = vsel %vm558, %v1848, %v1849
  %v1855 = vsel %vm558, %v1847, %v1848
  %v1856 = vsel %vm558, %v1846, %v1847
  %v1857 = vsel %vm558, %v1845, %v1846
  %v1858 = vsel %vm558, %v1844, %v1845
  %v1859 = vsel %vm558, %v1843, %v1844
  %v1860 = vsel %vm558, %v1842, %v1843
  %v1861 = vsel %vm558, %v1841, %v1842
  %v1862 = vsel %vm558, %v1840, %v1841
  %v1863 = vsel %vm558, %v1839, %v1840
  %v1864 = vsel %vm558, %v1838, %v1839
  %v1865 = vsel %vm558, %v1837, %v1838
  %v1866 = vsel %vm558, %v1836, %v1837
  %v1867 = vsel %vm558, %v1851, %v1836
  %v1868 = vsel %vm903, %v1866, 0.0
  %v1869 = vsel %vm904, %v1865, 0.0
  %v1870 = vsel %vm905, %v1864, 0.0
  %v1871 = vsel %vm906, %v1863, 0.0
  %v1872 = vsel %vm907, %v1862, 0.0
  %v1873 = vsel %vm908, %v1861, 0.0
  %v1874 = vsel %vm909, %v1860, 0.0
  %v1875 = vsel %vm910, %v1859, 0.0
  %v1876 = vsel %vm911, %v1858, 0.0
  %v1877 = vsel %vm912, %v1857, 0.0
  %v1878 = vsel %vm913, %v1856, 0.0
  %v1879 = vsel %vm914, %v1855, 0.0
  %v1880 = vsel %vm915, %v1854, 0.0
  %v1881 = vsel %vm916, %v1853, 0.0
  %v1882 = vsel %vm917, %v1852, 0.0
  %v1883 = vsel %vm918, %v1867, 0.0
  %1900 = vrot.lane.b32.xlu0 %v1772, 64
  %v1901 = vpop.permute.xlu0 %1900
  %1902 = vrot.lane.b32.xlu0 %v1773, 64
  %v1903 = vpop.permute.xlu0 %1902
  %1904 = vrot.lane.b32.xlu0 %v1774, 64
  %v1905 = vpop.permute.xlu0 %1904
  %1906 = vrot.lane.b32.xlu0 %v1775, 64
  %v1907 = vpop.permute.xlu0 %1906
  %1908 = vrot.lane.b32.xlu0 %v1776, 64
  %v1909 = vpop.permute.xlu0 %1908
  %1910 = vrot.lane.b32.xlu0 %v1777, 64
  %v1911 = vpop.permute.xlu0 %1910
  %1912 = vrot.lane.b32.xlu0 %v1778, 64
  %v1913 = vpop.permute.xlu0 %1912
  %1914 = vrot.lane.b32.xlu0 %v1779, 64
  %v1915 = vpop.permute.xlu0 %1914
  %1916 = vrot.lane.b32.xlu0 %v1780, 64
  %v1917 = vpop.permute.xlu0 %1916
  %1918 = vrot.lane.b32.xlu0 %v1781, 64
  %v1919 = vpop.permute.xlu0 %1918
  %1920 = vrot.lane.b32.xlu0 %v1782, 64
  %v1921 = vpop.permute.xlu0 %1920
  %1922 = vrot.lane.b32.xlu0 %v1783, 64
  %v1923 = vpop.permute.xlu0 %1922
  %1924 = vrot.lane.b32.xlu0 %v1784, 64
  %v1925 = vpop.permute.xlu0 %1924
  %1926 = vrot.lane.b32.xlu0 %v1785, 64
  %v1927 = vpop.permute.xlu0 %1926
  %1928 = vrot.lane.b32.xlu0 %v1786, 64
  %v1929 = vpop.permute.xlu0 %1928
  %1930 = vrot.lane.b32.xlu0 %v1787, 64
  %v1931 = vpop.permute.xlu0 %1930
  %v1948 = vsel %vm1080, %v1820, %v1901
  %v1949 = vsel %vm1080, %v1821, %v1903
  %v1950 = vsel %vm1080, %v1822, %v1905
  %v1951 = vsel %vm1080, %v1823, %v1907
  %v1952 = vsel %vm1080, %v1824, %v1909
  %v1953 = vsel %vm1080, %v1825, %v1911
  %v1954 = vsel %vm1080, %v1826, %v1913
  %v1955 = vsel %vm1080, %v1827, %v1915
  %v1956 = vsel %vm1080, %v1828, %v1917
  %v1957 = vsel %vm1080, %v1829, %v1919
  %v1958 = vsel %vm1080, %v1830, %v1921
  %v1959 = vsel %vm1080, %v1831, %v1923
  %v1960 = vsel %vm1080, %v1832, %v1925
  %v1961 = vsel %vm1080, %v1833, %v1927
  %v1962 = vsel %vm1080, %v1834, %v1929
  %v1963 = vsel %vm1080, %v1835, %v1931
  %v1964 = vpack.c.bf16 %v1949, %v1948
  %v1965 = vpack.c.bf16 %v1869, %v1868
  %v1966 = vpack.c.bf16 %v1951, %v1950
  %v1967 = vpack.c.bf16 %v1871, %v1870
  %v1968 = vpack.c.bf16 %v1953, %v1952
  %v1969 = vpack.c.bf16 %v1873, %v1872
  %v1970 = vpack.c.bf16 %v1955, %v1954
  %v1971 = vpack.c.bf16 %v1875, %v1874
  %v1972 = vpack.c.bf16 %v1957, %v1956
  %v1973 = vpack.c.bf16 %v1877, %v1876
  %v1974 = vpack.c.bf16 %v1959, %v1958
  %v1975 = vpack.c.bf16 %v1879, %v1878
  %v1976 = vpack.c.bf16 %v1961, %v1960
  %v1977 = vpack.c.bf16 %v1881, %v1880
  %v1978 = vpack.c.bf16 %v1963, %v1962
  %v1979 = vpack.c.bf16 %v1883, %v1882
  %v1980 = vld [vmem:[%s2 + $0x90] sm:$0xf]
  %v1981 = vld [vmem:[%s2 + $0x94] sm:$0xf]
  %v1982 = vld [vmem:[%s2 + $0x98] sm:$0xf]
  %v1983 = vld [vmem:[%s2 + $0x9c] sm:$0xf]
  %v1984 = vld [vmem:[%s2 + $0xa0] sm:$0xf]
  %v1985 = vld [vmem:[%s2 + $0xa4] sm:$0xf]
  %v1986 = vld [vmem:[%s2 + $0xa8] sm:$0xf]
  %v1987 = vld [vmem:[%s2 + $0xac] sm:$0xf]
  %v1988 = vld [vmem:[%s2 + $0xb0] sm:$0xf]
  %v1989 = vld [vmem:[%s2 + $0xb4] sm:$0xf]
  %v1990 = vld [vmem:[%s2 + $0xb8] sm:$0xf]
  %v1991 = vld [vmem:[%s2 + $0xbc] sm:$0xf]
  %v1992 = vld [vmem:[%s2 + $0xc0] sm:$0xf]
  %v1993 = vld [vmem:[%s2 + $0xc4] sm:$0xf]
  %v1994 = vld [vmem:[%s2 + $0xc8] sm:$0xf]
  %v1995 = vld [vmem:[%s2 + $0xcc] sm:$0xf]
  %v1996 = vld [vmem:[%s2 + $0xd0] sm:$0xf]
  %v1997 = vld [vmem:[%s2 + $0xd4] sm:$0xf]
  %v1998 = vld [vmem:[%s2 + $0xd8] sm:$0xf]
  %v1999 = vld [vmem:[%s2 + $0xdc] sm:$0xf]
  %v2000 = vld [vmem:[%s2 + $0xe0] sm:$0xf]
  %v2001 = vld [vmem:[%s2 + $0xe4] sm:$0xf]
  %v2002 = vld [vmem:[%s2 + $0xe8] sm:$0xf]
  %v2003 = vld [vmem:[%s2 + $0xec] sm:$0xf]
  %v2004 = vlaneseq
  %v2005 = vshrl.u32 %v2004, 7
  %v2006 = vsub.s32 3, %v2005
  %v2007 = vrot.slane %v275, %v2006
  %v2032 = vunpack.c.l.b16 %v1980
  %v2033 = vunpack.c.l.b16 %v1981
  %v2034 = vunpack.c.l.b16 %v1982
  %v2035 = vunpack.c.l.b16 %v1983
  %v2036 = vunpack.c.l.b16 %v1984
  %v2037 = vunpack.c.l.b16 %v1985
  %v2038 = vunpack.c.l.b16 %v1986
  %v2039 = vunpack.c.l.b16 %v1987
  %v2040 = vunpack.c.l.b16 %v1988
  %v2041 = vunpack.c.l.b16 %v1989
  %v2042 = vunpack.c.l.b16 %v1990
  %v2043 = vunpack.c.l.b16 %v1991
  %v2044 = vunpack.c.l.b16 %v1992
  %v2045 = vunpack.c.l.b16 %v1993
  %v2046 = vunpack.c.l.b16 %v1994
  %v2047 = vunpack.c.l.b16 %v1995
  %v2048 = vunpack.c.l.b16 %v1996
  %v2049 = vunpack.c.l.b16 %v1997
  %v2050 = vunpack.c.l.b16 %v1998
  %v2051 = vunpack.c.l.b16 %v1999
  %v2052 = vunpack.c.l.b16 %v2000
  %v2053 = vunpack.c.l.b16 %v2001
  %v2054 = vunpack.c.l.b16 %v2002
  %v2055 = vunpack.c.l.b16 %v2003
  %v2056 = vpack.c.b16 %v2033, %v2032
  %v2057 = vpack.c.b16 %v2035, %v2034
  %v2058 = vpack.c.b16 %v2037, %v2036
  %v2059 = vpack.c.b16 %v2039, %v2038
  %v2060 = vpack.c.b16 %v2041, %v2040
  %v2061 = vpack.c.b16 %v2043, %v2042
  %v2062 = vpack.c.b16 %v2045, %v2044
  %v2063 = vpack.c.b16 %v2047, %v2046
  %v2064 = vpack.c.b16 %v2049, %v2048
  %v2065 = vpack.c.b16 %v2051, %v2050
  %v2066 = vpack.c.b16 %v2053, %v2052
  %v2067 = vpack.c.b16 %v2055, %v2054
  %v2081 = vsel %vm1080, %v1965, 0
  %v2084 = vsel %vm1080, %v1967, 0
  %v2087 = vsel %vm1080, %v1969, 0
  %v2090 = vsel %vm1080, %v1971, 0
  %v2093 = vsel %vm1080, %v1973, 0
  %v2096 = vsel %vm1080, %v1975, 0
  %v2099 = vsel %vm1080, %v1977, 0
  %v2102 = vsel %vm1080, %v1979, 0
  %2104 = vmatprep.subr.bf16.mxu0 0
  %2105 = vmatpush1.bf16.msra.mxu0 %v2063
  %2106 = vmatprep.subr.bf16.mxu0 0
  %2107 = vmatpush1.bf16.msra.mxu0 %v2062
  %2108 = vmatprep.subr.bf16.mxu0 0
  %2109 = vmatpush1.bf16.msra.mxu0 %v2061
  %2110 = vmatprep.subr.bf16.mxu0 0
  %2111 = vmatpush1.bf16.msra.mxu0 %v2060
  %2112 = vmatprep.subr.bf16.mxu0 0
  %2113 = vmatpush1.bf16.msra.mxu0 %v2059
  %2114 = vmatprep.subr.bf16.mxu0 0
  %2115 = vmatpush1.bf16.msra.mxu0 %v2058
  %2116 = vmatprep.subr.bf16.mxu0 0
  %2117 = vmatpush1.bf16.msra.mxu0 %v2057
  %2118 = vmatprep.subr.bf16.mxu0 0
  %2119 = vmatpush1.bf16.msra.mxu0 %v2056
  %2120 = vmatprep.subr.bf16.mxu0 0
  %2121 = vmatpush2.bf16.msra.mxu0 0
  %2122 = vmatprep.subr.bf16.mxu0 0
  %2123 = vmatpush2.bf16.msra.mxu0 0
  %2124 = vmatprep.subr.bf16.mxu0 0
  %2125 = vmatpush2.bf16.msra.mxu0 0
  %2126 = vmatprep.subr.bf16.mxu0 0
  %2127 = vmatpush2.bf16.msra.mxu0 0
  %2128 = vmatprep.subr.bf16.mxu0 0
  %2129 = vmatpush2.bf16.msra.mxu0 %v2067
  %2130 = vmatprep.subr.bf16.mxu0 0
  %2131 = vmatpush2.bf16.msra.mxu0 %v2066
  %2132 = vmatprep.subr.bf16.mxu0 0
  %2133 = vmatpush2.bf16.msra.mxu0 %v2065
  %2134 = vmatprep.subr.bf16.mxu0 0
  %2135 = vmatpush2.bf16.msra.mxu0 %v2064
  %2136 = vmatprep.mubr.bf16.mxu0 %v2081
  %2137 = vmatmul.mubr.bf16.gmra.mxu0 %v1964
  %v2138 = vpop.f32.mrf.mxu0
  %v2139 = vadd.f32 %v2007, %v2138
  %v2140 = vpop.f32.mrf.mxu0
  %v2141 = vpop.f32.mrf.mxu0
  %v2142 = vadd.f32 %v2007, %v2141
  %v2143 = vpop.f32.mrf.mxu0
  %2144 = vmatprep.mubr.bf16.mxu0 %v2084
  %2145 = vmatmul.mubr.bf16.gmra.mxu0 %v1966
  %v2146 = vpop.f32.mrf.mxu0
  %v2147 = vadd.f32 %v2007, %v2146
  %v2148 = vpop.f32.mrf.mxu0
  %v2149 = vpop.f32.mrf.mxu0
  %v2150 = vadd.f32 %v2007, %v2149
  %v2151 = vpop.f32.mrf.mxu0
  %2152 = vmatprep.mubr.bf16.mxu0 %v2087
  %2153 = vmatmul.mubr.bf16.gmra.mxu0 %v1968
  %v2154 = vpop.f32.mrf.mxu0
  %v2155 = vadd.f32 %v2007, %v2154
  %v2156 = vpop.f32.mrf.mxu0
  %v2157 = vpop.f32.mrf.mxu0
  %v2158 = vadd.f32 %v2007, %v2157
  %v2159 = vpop.f32.mrf.mxu0
  %2160 = vmatprep.mubr.bf16.mxu0 %v2090
  %2161 = vmatmul.mubr.bf16.gmra.mxu0 %v1970
  %v2162 = vpop.f32.mrf.mxu0
  %v2163 = vadd.f32 %v2007, %v2162
  %v2164 = vpop.f32.mrf.mxu0
  %v2165 = vpop.f32.mrf.mxu0
  %v2166 = vadd.f32 %v2007, %v2165
  %v2167 = vpop.f32.mrf.mxu0
  %2168 = vmatprep.mubr.bf16.mxu0 %v2093
  %2169 = vmatmul.mubr.bf16.gmra.mxu0 %v1972
  %v2170 = vpop.f32.mrf.mxu0
  %v2171 = vadd.f32 %v2007, %v2170
  %v2172 = vpop.f32.mrf.mxu0
  %v2173 = vpop.f32.mrf.mxu0
  %v2174 = vadd.f32 %v2007, %v2173
  %v2175 = vpop.f32.mrf.mxu0
  %2176 = vmatprep.mubr.bf16.mxu0 %v2096
  %2177 = vmatmul.mubr.bf16.gmra.mxu0 %v1974
  %v2178 = vpop.f32.mrf.mxu0
  %v2179 = vadd.f32 %v2007, %v2178
  %v2180 = vpop.f32.mrf.mxu0
  %v2181 = vpop.f32.mrf.mxu0
  %v2182 = vadd.f32 %v2007, %v2181
  %v2183 = vpop.f32.mrf.mxu0
  %2184 = vmatprep.mubr.bf16.mxu0 %v2099
  %2185 = vmatmul.mubr.bf16.gmra.mxu0 %v1976
  %v2186 = vpop.f32.mrf.mxu0
  %v2187 = vadd.f32 %v2007, %v2186
  %v2188 = vpop.f32.mrf.mxu0
  %v2189 = vpop.f32.mrf.mxu0
  %v2190 = vadd.f32 %v2007, %v2189
  %v2191 = vpop.f32.mrf.mxu0
  %2192 = vmatprep.mubr.bf16.mxu0 %v2102
  %2193 = vmatmul.mubr.bf16.gmra.mxu0 %v1978
  %v2194 = vpop.f32.mrf.mxu0
  %v2195 = vadd.f32 %v2007, %v2194
  %v2196 = vpop.f32.mrf.mxu0
  %v2197 = vpop.f32.mrf.mxu0
  %v2198 = vadd.f32 %v2007, %v2197
  %v2199 = vpop.f32.mrf.mxu0
  %2200 = vdwg.mxu0
  %vm2201 = vcmp.gt.f32.partialorder %v2139, 0.0
  %vm2202 = vcmp.gt.f32.partialorder %v2142, 0.0
  %vm2203 = vcmp.gt.f32.partialorder %v2147, 0.0
  %vm2204 = vcmp.gt.f32.partialorder %v2150, 0.0
  %vm2205 = vcmp.gt.f32.partialorder %v2155, 0.0
  %vm2206 = vcmp.gt.f32.partialorder %v2158, 0.0
  %vm2207 = vcmp.gt.f32.partialorder %v2163, 0.0
  %vm2208 = vcmp.gt.f32.partialorder %v2166, 0.0
  %vm2209 = vcmp.gt.f32.partialorder %v2171, 0.0
  %vm2210 = vcmp.gt.f32.partialorder %v2174, 0.0
  %vm2211 = vcmp.gt.f32.partialorder %v2179, 0.0
  %vm2212 = vcmp.gt.f32.partialorder %v2182, 0.0
  %vm2213 = vcmp.gt.f32.partialorder %v2187, 0.0
  %vm2214 = vcmp.gt.f32.partialorder %v2190, 0.0
  %vm2215 = vcmp.gt.f32.partialorder %v2195, 0.0
  %vm2216 = vcmp.gt.f32.partialorder %v2198, 0.0
  %v2217 = vmul.f32 %v2139, 0.01
  %v2218 = vmul.f32 %v2142, 0.01
  %v2219 = vmul.f32 %v2147, 0.01
  %v2220 = vmul.f32 %v2150, 0.01
  %v2221 = vmul.f32 %v2155, 0.01
  %v2222 = vmul.f32 %v2158, 0.01
  %v2223 = vmul.f32 %v2163, 0.01
  %v2224 = vmul.f32 %v2166, 0.01
  %v2225 = vmul.f32 %v2171, 0.01
  %v2226 = vmul.f32 %v2174, 0.01
  %v2227 = vmul.f32 %v2179, 0.01
  %v2228 = vmul.f32 %v2182, 0.01
  %v2229 = vmul.f32 %v2187, 0.01
  %v2230 = vmul.f32 %v2190, 0.01
  %v2231 = vmul.f32 %v2195, 0.01
  %v2232 = vmul.f32 %v2198, 0.01
  %v2233 = vsel %vm2201, %v2139, %v2217
  %v2234 = vsel %vm2202, %v2142, %v2218
  %v2235 = vsel %vm2203, %v2147, %v2219
  %v2236 = vsel %vm2204, %v2150, %v2220
  %v2237 = vsel %vm2205, %v2155, %v2221
  %v2238 = vsel %vm2206, %v2158, %v2222
  %v2239 = vsel %vm2207, %v2163, %v2223
  %v2240 = vsel %vm2208, %v2166, %v2224
  %v2241 = vsel %vm2209, %v2171, %v2225
  %v2242 = vsel %vm2210, %v2174, %v2226
  %v2243 = vsel %vm2211, %v2179, %v2227
  %v2244 = vsel %vm2212, %v2182, %v2228
  %v2245 = vsel %vm2213, %v2187, %v2229
  %v2246 = vsel %vm2214, %v2190, %v2230
  %v2247 = vsel %vm2215, %v2195, %v2231
  %v2248 = vsel %vm2216, %v2198, %v2232
  %v2249 = vpack.c.bf16 %v2234, %v2233
  %v2250 = vpack.c.bf16 %v2236, %v2235
  %v2251 = vpack.c.bf16 %v2238, %v2237
  %v2252 = vpack.c.bf16 %v2240, %v2239
  %v2253 = vpack.c.bf16 %v2242, %v2241
  %v2254 = vpack.c.bf16 %v2244, %v2243
  %v2255 = vpack.c.bf16 %v2246, %v2245
  %v2256 = vpack.c.bf16 %v2248, %v2247
  %v2257 = vld [vmem:[%s2 + $0xf0] sm:$0xf]
  %v2258 = vld [vmem:[%s2 + $0xf4] sm:$0xf]
  %v2259 = vld [vmem:[%s2 + $0xf8] sm:$0xf]
  %v2260 = vld [vmem:[%s2 + $0xfc] sm:$0xf]
  %v2261 = vld [vmem:[%s2 + $0x100] sm:$0xf]
  %v2262 = vld [vmem:[%s2 + $0x104] sm:$0xf]
  %v2263 = vld [vmem:[%s2 + $0x108] sm:$0xf]
  %v2264 = vld [vmem:[%s2 + $0x10c] sm:$0xf]
  %v2265 = vlaneseq
  %v2266 = vshrl.u32 %v2265, 7
  %v2267 = vsub.s32 4, %v2266
  %v2268 = vrot.slane %v275, %v2267
  %v2277 = vunpack.c.l.b16 %v2257
  %v2278 = vunpack.c.l.b16 %v2258
  %v2279 = vunpack.c.l.b16 %v2259
  %v2280 = vunpack.c.l.b16 %v2260
  %v2281 = vunpack.c.l.b16 %v2261
  %v2282 = vunpack.c.l.b16 %v2262
  %v2283 = vunpack.c.l.b16 %v2263
  %v2284 = vunpack.c.l.b16 %v2264
  %v2285 = vpack.c.b16 %v2278, %v2277
  %v2286 = vpack.c.b16 %v2280, %v2279
  %v2287 = vpack.c.b16 %v2282, %v2281
  %v2288 = vpack.c.b16 %v2284, %v2283
  %v2294 = vsel %vm1080, %v2249, 0
  %v2297 = vsel %vm1080, %v2250, 0
  %v2300 = vsel %vm1080, %v2251, 0
  %v2303 = vsel %vm1080, %v2252, 0
  %v2306 = vsel %vm1080, %v2253, 0
  %v2309 = vsel %vm1080, %v2254, 0
  %v2312 = vsel %vm1080, %v2255, 0
  %v2315 = vsel %vm1080, %v2256, 0
  %2317 = vmatprep.subr.bf16.mxu0 0
  %2318 = vmatpush1.bf16.msra.mxu0 0
  %2319 = vmatprep.subr.bf16.mxu0 0
  %2320 = vmatpush1.bf16.msra.mxu0 0
  %2321 = vmatprep.subr.bf16.mxu0 0
  %2322 = vmatpush1.bf16.msra.mxu0 0
  %2323 = vmatprep.subr.bf16.mxu0 0
  %2324 = vmatpush1.bf16.msra.mxu0 0
  %2325 = vmatprep.subr.bf16.mxu0 0
  %2326 = vmatpush1.bf16.msra.mxu0 %v2288
  %2327 = vmatprep.subr.bf16.mxu0 0
  %2328 = vmatpush1.bf16.msra.mxu0 %v2287
  %2329 = vmatprep.subr.bf16.mxu0 0
  %2330 = vmatpush1.bf16.msra.mxu0 %v2286
  %2331 = vmatprep.subr.bf16.mxu0 0
  %2332 = vmatpush1.bf16.msra.mxu0 %v2285
  %2333 = vmatprep.subr.bf16.mxu0 0
  %2334 = vmatpush2.bf16.msra.mxu0 0
  %2335 = vmatprep.subr.bf16.mxu0 0
  %2336 = vmatpush2.bf16.msra.mxu0 0
  %2337 = vmatprep.subr.bf16.mxu0 0
  %2338 = vmatpush2.bf16.msra.mxu0 0
  %2339 = vmatprep.subr.bf16.mxu0 0
  %2340 = vmatpush2.bf16.msra.mxu0 0
  %2341 = vmatprep.subr.bf16.mxu0 0
  %2342 = vmatpush2.bf16.msra.mxu0 0
  %2343 = vmatprep.subr.bf16.mxu0 0
  %2344 = vmatpush2.bf16.msra.mxu0 0
  %2345 = vmatprep.subr.bf16.mxu0 0
  %2346 = vmatpush2.bf16.msra.mxu0 0
  %2347 = vmatprep.subr.bf16.mxu0 0
  %2348 = vmatpush2.bf16.msra.mxu0 0
  %2349 = vmatprep.mubr.bf16.mxu0 0
  %2350 = vmatmul.mubr.bf16.gmra.mxu0 %v2294
  %v2351 = vpop.f32.mrf.mxu0
  %v2352 = vadd.f32 %v2268, %v2351
  %v2353 = vpop.f32.mrf.mxu0
  %v2354 = vpop.f32.mrf.mxu0
  %v2355 = vadd.f32 %v2268, %v2354
  %v2356 = vpop.f32.mrf.mxu0
  %2357 = vmatprep.mubr.bf16.mxu0 0
  %2358 = vmatmul.mubr.bf16.gmra.mxu0 %v2297
  %v2359 = vpop.f32.mrf.mxu0
  %v2360 = vadd.f32 %v2268, %v2359
  %v2361 = vpop.f32.mrf.mxu0
  %v2362 = vpop.f32.mrf.mxu0
  %v2363 = vadd.f32 %v2268, %v2362
  %v2364 = vpop.f32.mrf.mxu0
  %2365 = vmatprep.mubr.bf16.mxu0 0
  %2366 = vmatmul.mubr.bf16.gmra.mxu0 %v2300
  %v2367 = vpop.f32.mrf.mxu0
  %v2368 = vadd.f32 %v2268, %v2367
  %v2369 = vpop.f32.mrf.mxu0
  %v2370 = vpop.f32.mrf.mxu0
  %v2371 = vadd.f32 %v2268, %v2370
  %v2372 = vpop.f32.mrf.mxu0
  %2373 = vmatprep.mubr.bf16.mxu0 0
  %2374 = vmatmul.mubr.bf16.gmra.mxu0 %v2303
  %v2375 = vpop.f32.mrf.mxu0
  %v2376 = vadd.f32 %v2268, %v2375
  %v2377 = vpop.f32.mrf.mxu0
  %v2378 = vpop.f32.mrf.mxu0
  %v2379 = vadd.f32 %v2268, %v2378
  %v2380 = vpop.f32.mrf.mxu0
  %2381 = vmatprep.mubr.bf16.mxu0 0
  %2382 = vmatmul.mubr.bf16.gmra.mxu0 %v2306
  %v2383 = vpop.f32.mrf.mxu0
  %v2384 = vadd.f32 %v2268, %v2383
  %v2385 = vpop.f32.mrf.mxu0
  %v2386 = vpop.f32.mrf.mxu0
  %v2387 = vadd.f32 %v2268, %v2386
  %v2388 = vpop.f32.mrf.mxu0
  %2389 = vmatprep.mubr.bf16.mxu0 0
  %2390 = vmatmul.mubr.bf16.gmra.mxu0 %v2309
  %v2391 = vpop.f32.mrf.mxu0
  %v2392 = vadd.f32 %v2268, %v2391
  %v2393 = vpop.f32.mrf.mxu0
  %v2394 = vpop.f32.mrf.mxu0
  %v2395 = vadd.f32 %v2268, %v2394
  %v2396 = vpop.f32.mrf.mxu0
  %2397 = vmatprep.mubr.bf16.mxu0 0
  %2398 = vmatmul.mubr.bf16.gmra.mxu0 %v2312
  %v2399 = vpop.f32.mrf.mxu0
  %v2400 = vadd.f32 %v2268, %v2399
  %v2401 = vpop.f32.mrf.mxu0
  %v2402 = vpop.f32.mrf.mxu0
  %v2403 = vadd.f32 %v2268, %v2402
  %v2404 = vpop.f32.mrf.mxu0
  %2405 = vmatprep.mubr.bf16.mxu0 0
  %2406 = vmatmul.mubr.bf16.gmra.mxu0 %v2315
  %v2407 = vpop.f32.mrf.mxu0
  %v2408 = vadd.f32 %v2268, %v2407
  %v2409 = vpop.f32.mrf.mxu0
  %v2410 = vpop.f32.mrf.mxu0
  %v2411 = vadd.f32 %v2268, %v2410
  %v2412 = vpop.f32.mrf.mxu0
  %2413 = vdwg.mxu0
  %vm2414 = vcmp.gt.f32.partialorder %v2352, 0.0
  %vm2415 = vcmp.gt.f32.partialorder %v2355, 0.0
  %vm2416 = vcmp.gt.f32.partialorder %v2360, 0.0
  %vm2417 = vcmp.gt.f32.partialorder %v2363, 0.0
  %vm2418 = vcmp.gt.f32.partialorder %v2368, 0.0
  %vm2419 = vcmp.gt.f32.partialorder %v2371, 0.0
  %vm2420 = vcmp.gt.f32.partialorder %v2376, 0.0
  %vm2421 = vcmp.gt.f32.partialorder %v2379, 0.0
  %vm2422 = vcmp.gt.f32.partialorder %v2384, 0.0
  %vm2423 = vcmp.gt.f32.partialorder %v2387, 0.0
  %vm2424 = vcmp.gt.f32.partialorder %v2392, 0.0
  %vm2425 = vcmp.gt.f32.partialorder %v2395, 0.0
  %vm2426 = vcmp.gt.f32.partialorder %v2400, 0.0
  %vm2427 = vcmp.gt.f32.partialorder %v2403, 0.0
  %vm2428 = vcmp.gt.f32.partialorder %v2408, 0.0
  %vm2429 = vcmp.gt.f32.partialorder %v2411, 0.0
  %v2430 = vmul.f32 %v2352, 0.01
  %v2431 = vmul.f32 %v2355, 0.01
  %v2432 = vmul.f32 %v2360, 0.01
  %v2433 = vmul.f32 %v2363, 0.01
  %v2434 = vmul.f32 %v2368, 0.01
  %v2435 = vmul.f32 %v2371, 0.01
  %v2436 = vmul.f32 %v2376, 0.01
  %v2437 = vmul.f32 %v2379, 0.01
  %v2438 = vmul.f32 %v2384, 0.01
  %v2439 = vmul.f32 %v2387, 0.01
  %v2440 = vmul.f32 %v2392, 0.01
  %v2441 = vmul.f32 %v2395, 0.01
  %v2442 = vmul.f32 %v2400, 0.01
  %v2443 = vmul.f32 %v2403, 0.01
  %v2444 = vmul.f32 %v2408, 0.01
  %v2445 = vmul.f32 %v2411, 0.01
  %v2446 = vsel %vm2414, %v2352, %v2430
  %v2447 = vsel %vm2415, %v2355, %v2431
  %v2448 = vsel %vm2416, %v2360, %v2432
  %v2449 = vsel %vm2417, %v2363, %v2433
  %v2450 = vsel %vm2418, %v2368, %v2434
  %v2451 = vsel %vm2419, %v2371, %v2435
  %v2452 = vsel %vm2420, %v2376, %v2436
  %v2453 = vsel %vm2421, %v2379, %v2437
  %v2454 = vsel %vm2422, %v2384, %v2438
  %v2455 = vsel %vm2423, %v2387, %v2439
  %v2456 = vsel %vm2424, %v2392, %v2440
  %v2457 = vsel %vm2425, %v2395, %v2441
  %v2458 = vsel %vm2426, %v2400, %v2442
  %v2459 = vsel %vm2427, %v2403, %v2443
  %v2460 = vsel %vm2428, %v2408, %v2444
  %v2461 = vsel %vm2429, %v2411, %v2445
  %v2462 = vsel %vm1080, %v2446, 0.0
  %v2463 = vsel %vm1080, %v2447, 0.0
  %v2464 = vsel %vm1080, %v2448, 0.0
  %v2465 = vsel %vm1080, %v2449, 0.0
  %v2466 = vsel %vm1080, %v2450, 0.0
  %v2467 = vsel %vm1080, %v2451, 0.0
  %v2468 = vsel %vm1080, %v2452, 0.0
  %v2469 = vsel %vm1080, %v2453, 0.0
  %v2470 = vsel %vm1080, %v2454, 0.0
  %v2471 = vsel %vm1080, %v2455, 0.0
  %v2472 = vsel %vm1080, %v2456, 0.0
  %v2473 = vsel %vm1080, %v2457, 0.0
  %v2474 = vsel %vm1080, %v2458, 0.0
  %v2475 = vsel %vm1080, %v2459, 0.0
  %v2476 = vsel %vm1080, %v2460, 0.0
  %v2477 = vsel %vm1080, %v2461, 0.0
  %2478 = vst [vmem:[%s4] sm:$0xff] %v2462
  %2479 = vst [vmem:[%s4 + $0x8] sm:$0xff] %v2463
  %2480 = vst [vmem:[%s4 + $0x10] sm:$0xff] %v2464
  %2481 = vst [vmem:[%s4 + $0x18] sm:$0xff] %v2465
  %2482 = vst [vmem:[%s4 + $0x20] sm:$0xff] %v2466
  %2483 = vst [vmem:[%s4 + $0x28] sm:$0xff] %v2467
  %2484 = vst [vmem:[%s4 + $0x30] sm:$0xff] %v2468
  %2485 = vst [vmem:[%s4 + $0x38] sm:$0xff] %v2469
  %2486 = vst [vmem:[%s4 + $0x40] sm:$0xff] %v2470
  %2487 = vst [vmem:[%s4 + $0x48] sm:$0xff] %v2471
  %2488 = vst [vmem:[%s4 + $0x50] sm:$0xff] %v2472
  %2489 = vst [vmem:[%s4 + $0x58] sm:$0xff] %v2473
  %2490 = vst [vmem:[%s4 + $0x60] sm:$0xff] %v2474
  %2491 = vst [vmem:[%s4 + $0x68] sm:$0xff] %v2475
  %2492 = vst [vmem:[%s4 + $0x70] sm:$0xff] %v2476
  %2493 = vst [vmem:[%s4 + $0x78] sm:$0xff] %v2477
  // Predicated region
  $region18: #{prototype_forward.1} parent=0 // pred_check
    _
  $region19: #{prototype_forward.1} parent=0 // pred_check_branch
    %2495 = sbr.rel (0) target = $region21
  $region20: #{prototype_forward.1} parent=0 // pred_region
    _
  $region21: #{prototype_forward.1} parent=0 // pred_fallthru
    _
  // Predicated region
  $region22: #{prototype_forward.1} parent=0 // pred_check
    _
  $region23: #{prototype_forward.1} parent=0 // pred_check_branch
    %2497 = sbr.rel (0) target = $region25
  $region24: #{prototype_forward.1} parent=0 // pred_region
    _
  $region25: #{prototype_forward.1} parent=0 // pred_fallthru
    _

</llo_original>
